<compile_context>
chip_gen: v7x
topology: tpu7x:2x2x1
jax: 0.10.0
libtpu: 0.0.40
codegen_flags: <defaults>
</compile_context>

<pallas_src>
import functools
import math

import jax
import jax.numpy as jnp
from jax.experimental import pallas as pl
from jax.experimental.pallas import tpu as pltpu


def _attention_core(qp, kp, vp, ident2d, wo, bo, *, bt, L, S, H, Dh, cd):
    """Shared per-block attention math.

    qp: (bt*L, E) f32 projected queries (1/sqrt(Dh) already folded into the weights).
    kp: (bt*S, E) f32 projected keys.   vp: (bt*S, E) f32 projected values.
    ident2d: (bt*L, E) identity tensor (stays f32).
    wo: (E, E) out-proj weight (transposed), bo: (1, E) out-proj bias.
    Returns (bt*L, E) f32.
    """
    qp_c = qp.astype(cd)
    kp_c = kp.astype(cd)
    vp_c = vp.astype(cd)

    # Per-(batch, head) operands with a single leading batch dim G = bt*H.
    # 3-D batched einsums are the known-good Mosaic matmul form; moving the head
    # dim from lanes to the batch axis is an unavoidable relayout for Dh << 128,
    # done once here with static slices.
    qh = jnp.stack([qp_c[b * L:(b + 1) * L, h * Dh:(h + 1) * Dh]
                    for b in range(bt) for h in range(H)], axis=0)    # (G, L, Dh)
    kh = jnp.stack([kp_c[b * S:(b + 1) * S, h * Dh:(h + 1) * Dh]
                    for b in range(bt) for h in range(H)], axis=0)    # (G, S, Dh)
    vh = jnp.stack([vp_c[b * S:(b + 1) * S, h * Dh:(h + 1) * Dh]
                    for b in range(bt) for h in range(H)], axis=0)    # (G, S, Dh)

    s = jnp.einsum('gld,gsd->gls', qh, kh,
                   preferred_element_type=jnp.float32)                # (G, L, S) f32
    m = jnp.max(s, axis=-1, keepdims=True)
    p = jnp.exp(s - m)
    denom = jnp.sum(p, axis=-1, keepdims=True)
    p = p * pl.reciprocal(denom, approx=True)      # EUP slot; softmax stats stay f32
    o = jnp.einsum('gls,gsd->gld', p.astype(cd), vh,
                   preferred_element_type=jnp.float32)                # (G, L, Dh)

    # Head-concat back to (bt*L, E), then ONE (bt*L, E) @ (E, E) out-projection
    # (no per-head weight slabs, no per-head add chain).
    o2 = jnp.concatenate(
        [jnp.concatenate([o[b * H + h] for h in range(H)], axis=-1)
         for b in range(bt)], axis=0)                                 # (bt*L, E)
    out = jnp.dot(o2.astype(cd), wo.astype(cd),
                  preferred_element_type=jnp.float32)
    return out + bo + ident2d          # bias / identity broadcast-added once (hoisted)


def _store_out(o_ref, out, *, bt, L, E, lane_dense):
    """Single store of the whole block; lane-dense (full 128-lane rows) when possible."""
    if lane_dense:
        rpack = 128 // E                  # query rows packed per 128-lane output row
        nrows = (L * E) // 128
        out3 = out.reshape(bt, L, E)      # leading-dim split only (layout-free)
        packed = jnp.stack(
            [jnp.concatenate([out3[:, r * rpack + j, :] for j in range(rpack)],
                             axis=-1)
             for r in range(nrows)], axis=1)                          # (bt, nrows, 128)
        o_ref[...] = packed.astype(o_ref.dtype)
    else:
        o_ref[...] = out.reshape(bt, L, E).astype(o_ref.dtype)


def _self_attn_kernel(xq_ref, x_ref, wqk_ref, bqk_ref, wv_ref, bv_ref,
                      wo_ref, bo_ref, o_ref, *, num_heads, compute_dtype,
                      lane_dense):
    """Self-attention fast path: q-input == k-input == x+pos, v-input == identity == x."""
    bt, L, E = xq_ref.shape
    H = num_heads
    Dh = E // H
    cd = compute_dtype

    xq = xq_ref[...].reshape(bt * L, E)              # (bt*L, E)  x + pos
    xv = x_ref[...].reshape(bt * L, E)               # (bt*L, E)  x (V input & identity)

    # Column-fused [Wq*scale | Wk] in-projection (q/k share the same input rows) plus
    # a separate V projection -- no wasted FLOPs, no row-stacking copy.
    qk = jnp.dot(xq.astype(cd), wqk_ref[...].astype(cd),
                 preferred_element_type=jnp.float32) + bqk_ref[...]   # (bt*L, 2E)
    vp = jnp.dot(xv.astype(cd), wv_ref[...].astype(cd),
                 preferred_element_type=jnp.float32) + bv_ref[...]    # (bt*L, E)

    out = _attention_core(qk[:, :E], qk[:, E:], vp, xv,
                          wo_ref[...], bo_ref[...],
                          bt=bt, L=L, S=L, H=H, Dh=Dh, cd=cd)
    _store_out(o_ref, out, bt=bt, L=L, E=E, lane_dense=lane_dense)

    # TODO(synk): for long sequences, tile S with an online-softmax (flash)
    # accumulator instead of holding the full (G, L, S) score matrix in VMEM
    # (required to fit v7x's 64 MiB VMEM at realistic decoder sizes).


def _cross_attn_kernel(q_ref, k_ref, v_ref, id_ref, wqkv_ref, bqkv_ref,
                       wo_ref, bo_ref, o_ref, *, num_heads, compute_dtype,
                       lane_dense):
    """General path: distinct query / key / value / identity tensors."""
    bt, L, E = q_ref.shape
    S = k_ref.shape[1]
    H = num_heads
    Dh = E // H
    cd = compute_dtype

    xq = q_ref[...].reshape(bt * L, E).astype(cd)
    xk = k_ref[...].reshape(bt * S, E).astype(cd)
    xv = v_ref[...].reshape(bt * S, E).astype(cd)
    ident = id_ref[...].reshape(bt * L, E)           # stays f32

    w = wqkv_ref[...].astype(cd)                     # (E, 3E) = [Wq*s | Wk | Wv]^T
    b = bqkv_ref[...]                                # (1, 3E)
    qp = jnp.dot(xq, w[:, :E], preferred_element_type=jnp.float32) + b[:, :E]
    kp = jnp.dot(xk, w[:, E:2 * E], preferred_element_type=jnp.float32) + b[:, E:2 * E]
    vp = jnp.dot(xv, w[:, 2 * E:], preferred_element_type=jnp.float32) + b[:, 2 * E:]

    out = _attention_core(qp, kp, vp, ident, wo_ref[...], bo_ref[...],
                          bt=bt, L=L, S=S, H=H, Dh=Dh, cd=cd)
    _store_out(o_ref, out, bt=bt, L=L, E=E, lane_dense=lane_dense)


def _pick_batch_block(batch):
    """Largest batch block that still leaves >= 2 grid steps (v7x has 2 TensorCores,
    and >= 2 steps also lets input DMA overlap compute).  For realistic decoder
    sizes bt (and eventually an S tile) must also be sized against VMEM: the f32
    score tensor alone is bt*H*L*S*4 bytes and v7x has only 64 MiB physical VMEM."""
    if batch <= 1:
        return 1
    for cand in (8, 4, 2, 1):
        if batch % cand == 0 and batch // cand >= 2:
            return cand
    return 1


def multihead_attention_pallas(query, key, value, identity, params, num_heads,
                               query_pos=None, key_pos=None,
                               compute_dtype=jnp.float32, vmem_limit_bytes=None):
    """query/key/value/identity: [L(or S), B, E] float32 (seq-first, PyTorch layout).

    compute_dtype: MXU operand dtype (accumulation is always f32).  bf16 is the
    recommended perf setting on v5e/v6e/v7x; the f32 default matches the PyTorch
    module most closely.  vmem_limit_bytes: raise the scoped-VMEM limit when
    scaling up (v5e's default scoped limit is only 16 MiB)."""
    L, B, E = query.shape
    assert E % num_heads == 0
    Dh = E // num_heads
    scale = 1.0 / math.sqrt(Dh)

    bt = _pick_batch_block(B)
    lane_dense = (E < 128) and (128 % E == 0) and ((L * E) % 128 == 0)
    nrows = (L * E) // 128 if lane_dense else None

    cp_kwargs = dict(dimension_semantics=("parallel",))
    if vmem_limit_bytes is not None:
        cp_kwargs["vmem_limit_bytes"] = vmem_limit_bytes
    compiler_params = pltpu.CompilerParams(**cp_kwargs)

    if lane_dense:
        out_shape = jax.ShapeDtypeStruct((B, nrows, 128), query.dtype)
        out_spec = pl.BlockSpec((bt, nrows, 128), lambda b: (b, 0, 0))
    else:
        out_shape = jax.ShapeDtypeStruct((B, L, E), query.dtype)
        out_spec = pl.BlockSpec((bt, L, E), lambda b: (b, 0, 0))

    wo_t, bo = params["wo_t"], params["bo"]

    self_attn = key is None and value is None and identity is None and key_pos is None
    if self_attn:
        # Fast path: only two activation tensors are streamed per block.
        xq = query + query_pos if query_pos is not None else query   # Q & K input
        x = query                                                     # V input & identity
        xq = jnp.transpose(xq, (1, 0, 2))    # [B, L, E]; fused with pos-add by XLA
        x = jnp.transpose(x, (1, 0, 2))

        wqk_t = jnp.concatenate([params["wq_t"] * scale, params["wk_t"]], axis=1)
        bqk = jnp.concatenate([params["bq"] * scale, params["bk"]], axis=1)

        kernel = functools.partial(_self_attn_kernel, num_heads=num_heads,
                                   compute_dtype=compute_dtype, lane_dense=lane_dense)
        out = pl.pallas_call(
            kernel,
            out_shape=out_shape,
            grid_spec=pltpu.PrefetchScalarGridSpec(
                num_scalar_prefetch=0,
                grid=(B // bt,),
                in_specs=[
                    pl.BlockSpec((bt, L, E), lambda b: (b, 0, 0)),   # x + pos
                    pl.BlockSpec((bt, L, E), lambda b: (b, 0, 0)),   # x
                    pl.BlockSpec((E, 2 * E), lambda b: (0, 0)),      # [Wq*s | Wk]^T
                    pl.BlockSpec((1, 2 * E), lambda b: (0, 0)),      # [bq*s | bk]
                    pl.BlockSpec((E, E), lambda b: (0, 0)),          # Wv^T
                    pl.BlockSpec((1, E), lambda b: (0, 0)),          # bv
                    pl.BlockSpec((E, E), lambda b: (0, 0)),          # Wo^T
                    pl.BlockSpec((1, E), lambda b: (0, 0)),          # bo
                ],
                out_specs=out_spec,
            ),
            compiler_params=compiler_params,
        )(xq, x, wqk_t, bqk, params["wv_t"], params["bv"], wo_t, bo)
    else:
        # General path, mirroring the module's defaulting rules.
        if key is None:
            key = query
        if value is None:
            value = key
        if identity is None:
            identity = query
        if key_pos is None and query_pos is not None and query_pos.shape == key.shape:
            key_pos = query_pos
        q_in = query + query_pos if query_pos is not None else query
        k_in = key + key_pos if key_pos is not None else key
        S = key.shape[0]

        q_in = jnp.transpose(q_in, (1, 0, 2))
        k_in = jnp.transpose(k_in, (1, 0, 2))
        v_in = jnp.transpose(value, (1, 0, 2))
        ident = jnp.transpose(identity, (1, 0, 2))

        w_qkv_t = jnp.concatenate([params["wq_t"] * scale, params["wk_t"],
                                   params["wv_t"]], axis=1)            # (E, 3E)
        b_qkv = jnp.concatenate([params["bq"] * scale, params["bk"],
                                 params["bv"]], axis=1)                # (1, 3E)

        kernel = functools.partial(_cross_attn_kernel, num_heads=num_heads,
                                   compute_dtype=compute_dtype, lane_dense=lane_dense)
        out = pl.pallas_call(
            kernel,
            out_shape=out_shape,
            grid_spec=pltpu.PrefetchScalarGridSpec(
                num_scalar_prefetch=0,
                grid=(B // bt,),
                in_specs=[
                    pl.BlockSpec((bt, L, E), lambda b: (b, 0, 0)),   # q (+pos)
                    pl.BlockSpec((bt, S, E), lambda b: (b, 0, 0)),   # k (+pos)
                    pl.BlockSpec((bt, S, E), lambda b: (b, 0, 0)),   # v
                    pl.BlockSpec((bt, L, E), lambda b: (b, 0, 0)),   # identity
                    pl.BlockSpec((E, 3 * E), lambda b: (0, 0)),      # [Wq*s|Wk|Wv]^T
                    pl.BlockSpec((1, 3 * E), lambda b: (0, 0)),      # fused biases
                    pl.BlockSpec((E, E), lambda b: (0, 0)),          # Wo^T
                    pl.BlockSpec((1, E), lambda b: (0, 0)),          # bo
                ],
                out_specs=out_spec,
            ),
            compiler_params=compiler_params,
        )(q_in, k_in, v_in, ident, w_qkv_t, b_qkv, wo_t, bo)

    if lane_dense:
        out = out.reshape(B, L, E)
    return jnp.transpose(out, (1, 0, 2))     # back to seq-first [L, B, E]


def multihead_attention_ref(query, key, value, identity, params, num_heads,
                            query_pos=None, key_pos=None):
    """Plain-JAX reference mirroring torch.nn.MultiheadAttention (eval, no dropout)."""
    if key is None:
        key = query
    if value is None:
        value = key
    if identity is None:
        identity = query
    if key_pos is None and query_pos is not None and query_pos.shape == key.shape:
        key_pos = query_pos
    if query_pos is not None:
        query = query + query_pos
    if key_pos is not None:
        key = key + key_pos

    L, B, E = query.shape
    S = key.shape[0]
    Dh = E // num_heads

    q = jnp.einsum("lbe,ef->lbf", query, params["wq_t"]) + params["bq"][0]
    k = jnp.einsum("sbe,ef->sbf", key, params["wk_t"]) + params["bk"][0]
    v = jnp.einsum("sbe,ef->sbf", value, params["wv_t"]) + params["bv"][0]

    q = q.reshape(L, B, num_heads, Dh) / math.sqrt(Dh)
    k = k.reshape(S, B, num_heads, Dh)
    v = v.reshape(S, B, num_heads, Dh)
    s = jnp.einsum("lbhd,sbhd->bhls", q, k)
    p = jax.nn.softmax(s, axis=-1)
    o = jnp.einsum("bhls,sbhd->lbhd", p, v).reshape(L, B, E)
    o = jnp.einsum("lbe,ef->lbf", o, params["wo_t"]) + params["bo"][0]
    return identity + o


def make_params(embed_dims, key):
    """Deterministic synthetic weights matching nn.MultiheadAttention's shapes."""
    k1, k2, k3 = jax.random.split(key, 3)
    in_proj_w = jax.random.normal(k1, (3 * embed_dims, embed_dims), jnp.float32) * 0.1
    in_proj_b = jax.random.normal(k2, (3 * embed_dims,), jnp.float32) * 0.1
    out_w = jax.random.normal(k3, (embed_dims, embed_dims), jnp.float32) * 0.1
    out_b = jnp.zeros((embed_dims,), jnp.float32)

    wq, wk, wv = jnp.split(in_proj_w, 3, axis=0)
    bq, bk, bv = jnp.split(in_proj_b, 3, axis=0)
    return {
        "wq_t": wq.T, "wk_t": wk.T, "wv_t": wv.T, "wo_t": out_w.T,
        "bq": bq[None, :], "bk": bk[None, :], "bv": bv[None, :],
        "bo": out_b[None, :],
    }


if __name__ == "__main__":
    embed_dims = 32
    num_heads = 4
    L = 8      # num_queries
    S = 16     # num_keys for the cross-attention check
    B = 2      # batch

    root = jax.random.PRNGKey(0)
    kq, kpos, kk, kv, kparam = jax.random.split(root, 5)

    # layout: [num_queries, batch, embed_dims]  (PyTorch batch_first=False)
    query = jax.random.normal(kq, (L, B, embed_dims), jnp.float32)
    query_pos = jax.random.normal(kpos, (L, B, embed_dims), jnp.float32)
    key = jax.random.normal(kk, (S, B, embed_dims), jnp.float32)
    value = jax.random.normal(kv, (S, B, embed_dims), jnp.float32)
    params = make_params(embed_dims, kparam)

    # --- default decoder self-attention call (key/value/identity None), f32 MXU ---
    self_fn = jax.jit(lambda qry, qpos: multihead_attention_pallas(
        qry, None, None, None, params, num_heads, query_pos=qpos))
    out = jax.block_until_ready(self_fn(query, query_pos))
    ref = multihead_attention_ref(query, None, None, None, params, num_heads,
                                  query_pos=query_pos)
    assert out.shape == (L, B, embed_dims)
    # approx-reciprocal softmax normalization -> slightly looser tolerance than exact f32
    assert jnp.allclose(out, ref, atol=2e-3, rtol=2e-3), "self-attn mismatch"

    # --- same call with bf16 MXU operands (f32 accumulation): recommended perf config ---
    self_bf16 = jax.jit(lambda qry, qpos: multihead_attention_pallas(
        qry, None, None, None, params, num_heads, query_pos=qpos,
        compute_dtype=jnp.bfloat16))
    out_bf16 = jax.block_until_ready(self_bf16(query, query_pos))
    assert jnp.allclose(out_bf16, ref, atol=5e-2, rtol=5e-2), "bf16 self-attn mismatch"

    # --- general (cross-attention) path: explicit key / value ---
    cross_fn = jax.jit(lambda qry, k, v, qpos: multihead_attention_pallas(
        qry, k, v, None, params, num_heads, query_pos=qpos))
    out_x = jax.block_until_ready(cross_fn(query, key, value, query_pos))
    ref_x = multihead_attention_ref(query, key, value, None, params, num_heads,
                                    query_pos=query_pos)
    assert out_x.shape == (L, B, embed_dims)
    assert jnp.allclose(out_x, ref_x, atol=2e-3, rtol=2e-3), "cross-attn mismatch"

    # TODO(synk): dropout layers (attn_drop/proj_drop/dropout_layer) are identity in
    # eval mode / drop_prob=0.0; attn_mask/key_padding_mask and the sampling/
    # fuse_coeff/use_ln branches (disabled in the default config) are not
    # implemented in-kernel.
    print("KERNEL_OK")
</pallas_src>

<mosaic_0001>
module attributes {stable_mosaic.version = 11 : i64} {
  func.func @_self_attn_kernel(%arg0: i32, %arg1: memref<1x8x32xf32, #tpu.memory_space<vmem>>, %arg2: memref<1x8x32xf32, #tpu.memory_space<vmem>>, %arg3: memref<32x64xf32, #tpu.memory_space<vmem>>, %arg4: memref<1x64xf32, #tpu.memory_space<vmem>>, %arg5: memref<32x32xf32, #tpu.memory_space<vmem>>, %arg6: memref<1x32xf32, #tpu.memory_space<vmem>>, %arg7: memref<32x32xf32, #tpu.memory_space<vmem>>, %arg8: memref<1x32xf32, #tpu.memory_space<vmem>>, %arg9: memref<1x2x128xf32, #tpu.memory_space<vmem>>) attributes {dimension_semantics = [#tpu.dimension_semantics<parallel>], iteration_bounds = array<i64: 2>, scalar_prefetch = 0 : i64, scratch_operands = 0 : i64, tpu.core_type = #tpu.core_type<tc>, window_params = [{transform_indices = @transform_0, window_bounds = array<i64: 1, 8, 32>}, {transform_indices = @transform_1, window_bounds = array<i64: 1, 8, 32>}, {pipeline_mode = #tpu.pipeline_mode<synchronous>, transform_indices = @transform_2, window_bounds = array<i64: 32, 64>}, {pipeline_mode = #tpu.pipeline_mode<synchronous>, transform_indices = @transform_3, window_bounds = array<i64: 1, 64>}, {pipeline_mode = #tpu.pipeline_mode<synchronous>, transform_indices = @transform_4, window_bounds = array<i64: 32, 32>}, {pipeline_mode = #tpu.pipeline_mode<synchronous>, transform_indices = @transform_5, window_bounds = array<i64: 1, 32>}, {pipeline_mode = #tpu.pipeline_mode<synchronous>, transform_indices = @transform_6, window_bounds = array<i64: 32, 32>}, {pipeline_mode = #tpu.pipeline_mode<synchronous>, transform_indices = @transform_7, window_bounds = array<i64: 1, 32>}, {transform_indices = @transform_8, window_bounds = array<i64: 1, 2, 128>}]} {
    %c0 = arith.constant 0 : index
    %c0_0 = arith.constant 0 : index
    %c0_1 = arith.constant 0 : index
    %0 = vector.load %arg1[%c0, %c0_0, %c0_1] : memref<1x8x32xf32, #tpu.memory_space<vmem>>, vector<1x8x32xf32>
    %1 = vector.shape_cast %0 : vector<1x8x32xf32> to vector<8x32xf32>
    %c0_2 = arith.constant 0 : index
    %c0_3 = arith.constant 0 : index
    %c0_4 = arith.constant 0 : index
    %2 = vector.load %arg2[%c0_2, %c0_3, %c0_4] : memref<1x8x32xf32, #tpu.memory_space<vmem>>, vector<1x8x32xf32>
    %3 = vector.shape_cast %2 : vector<1x8x32xf32> to vector<8x32xf32>
    %c0_5 = arith.constant 0 : index
    %c0_6 = arith.constant 0 : index
    %4 = vector.load %arg3[%c0_5, %c0_6] : memref<32x64xf32, #tpu.memory_space<vmem>>, vector<32x64xf32>
    %cst = arith.constant dense<0.000000e+00> : vector<8x64xf32>
    %5 = tpu.matmul %1, %4, %cst {dimension_numbers = #tpu.dot_dimension_numbers<[1], [0], [0], [1], [0, 0, 1, 1], [], []>} : vector<8x32xf32>, vector<32x64xf32>, vector<8x64xf32> -> vector<8x64xf32>
    %c0_7 = arith.constant 0 : index
    %c0_8 = arith.constant 0 : index
    %6 = vector.load %arg4[%c0_7, %c0_8] : memref<1x64xf32, #tpu.memory_space<vmem>>, vector<1x64xf32>
    %7 = vector.broadcast %6 : vector<1x64xf32> to vector<8x64xf32>
    %8 = arith.addf %5, %7 : vector<8x64xf32>
    %c0_9 = arith.constant 0 : index
    %c0_10 = arith.constant 0 : index
    %9 = vector.load %arg5[%c0_9, %c0_10] : memref<32x32xf32, #tpu.memory_space<vmem>>, vector<32x32xf32>
    %cst_11 = arith.constant dense<0.000000e+00> : vector<8x32xf32>
    %10 = tpu.matmul %3, %9, %cst_11 {dimension_numbers = #tpu.dot_dimension_numbers<[1], [0], [0], [1], [0, 0, 1, 1], [], []>} : vector<8x32xf32>, vector<32x32xf32>, vector<8x32xf32> -> vector<8x32xf32>
    %c0_12 = arith.constant 0 : index
    %c0_13 = arith.constant 0 : index
    %11 = vector.load %arg6[%c0_12, %c0_13] : memref<1x32xf32, #tpu.memory_space<vmem>>, vector<1x32xf32>
    %12 = vector.broadcast %11 : vector<1x32xf32> to vector<8x32xf32>
    %13 = arith.addf %10, %12 : vector<8x32xf32>
    %14 = vector.extract_strided_slice %8 {offsets = [0, 0], sizes = [8, 32], strides = [1, 1]} : vector<8x64xf32> to vector<8x32xf32>
    %15 = vector.extract_strided_slice %8 {offsets = [0, 32], sizes = [8, 32], strides = [1, 1]} : vector<8x64xf32> to vector<8x32xf32>
    %c0_14 = arith.constant 0 : index
    %c0_15 = arith.constant 0 : index
    %16 = vector.load %arg7[%c0_14, %c0_15] : memref<32x32xf32, #tpu.memory_space<vmem>>, vector<32x32xf32>
    %c0_16 = arith.constant 0 : index
    %c0_17 = arith.constant 0 : index
    %17 = vector.load %arg8[%c0_16, %c0_17] : memref<1x32xf32, #tpu.memory_space<vmem>>, vector<1x32xf32>
    %18 = vector.extract_strided_slice %14 {offsets = [0, 0], sizes = [8, 8], strides = [1, 1]} : vector<8x32xf32> to vector<8x8xf32>
    %19 = vector.extract_strided_slice %14 {offsets = [0, 8], sizes = [8, 8], strides = [1, 1]} : vector<8x32xf32> to vector<8x8xf32>
    %20 = vector.extract_strided_slice %14 {offsets = [0, 16], sizes = [8, 8], strides = [1, 1]} : vector<8x32xf32> to vector<8x8xf32>
    %21 = vector.extract_strided_slice %14 {offsets = [0, 24], sizes = [8, 8], strides = [1, 1]} : vector<8x32xf32> to vector<8x8xf32>
    %22 = vector.shape_cast %18 : vector<8x8xf32> to vector<1x8x8xf32>
    %23 = vector.shape_cast %19 : vector<8x8xf32> to vector<1x8x8xf32>
    %24 = vector.shape_cast %20 : vector<8x8xf32> to vector<1x8x8xf32>
    %25 = vector.shape_cast %21 : vector<8x8xf32> to vector<1x8x8xf32>
    %26 = tpu.concatenate %22, %23, %24, %25 in 0 : vector<1x8x8xf32>, vector<1x8x8xf32>, vector<1x8x8xf32>, vector<1x8x8xf32> -> vector<4x8x8xf32>
    %27 = vector.extract_strided_slice %15 {offsets = [0, 0], sizes = [8, 8], strides = [1, 1]} : vector<8x32xf32> to vector<8x8xf32>
    %28 = vector.extract_strided_slice %15 {offsets = [0, 8], sizes = [8, 8], strides = [1, 1]} : vector<8x32xf32> to vector<8x8xf32>
    %29 = vector.extract_strided_slice %15 {offsets = [0, 16], sizes = [8, 8], strides = [1, 1]} : vector<8x32xf32> to vector<8x8xf32>
    %30 = vector.extract_strided_slice %15 {offsets = [0, 24], sizes = [8, 8], strides = [1, 1]} : vector<8x32xf32> to vector<8x8xf32>
    %31 = vector.shape_cast %27 : vector<8x8xf32> to vector<1x8x8xf32>
    %32 = vector.shape_cast %28 : vector<8x8xf32> to vector<1x8x8xf32>
    %33 = vector.shape_cast %29 : vector<8x8xf32> to vector<1x8x8xf32>
    %34 = vector.shape_cast %30 : vector<8x8xf32> to vector<1x8x8xf32>
    %35 = tpu.concatenate %31, %32, %33, %34 in 0 : vector<1x8x8xf32>, vector<1x8x8xf32>, vector<1x8x8xf32>, vector<1x8x8xf32> -> vector<4x8x8xf32>
    %36 = vector.extract_strided_slice %13 {offsets = [0, 0], sizes = [8, 8], strides = [1, 1]} : vector<8x32xf32> to vector<8x8xf32>
    %37 = vector.extract_strided_slice %13 {offsets = [0, 8], sizes = [8, 8], strides = [1, 1]} : vector<8x32xf32> to vector<8x8xf32>
    %38 = vector.extract_strided_slice %13 {offsets = [0, 16], sizes = [8, 8], strides = [1, 1]} : vector<8x32xf32> to vector<8x8xf32>
    %39 = vector.extract_strided_slice %13 {offsets = [0, 24], sizes = [8, 8], strides = [1, 1]} : vector<8x32xf32> to vector<8x8xf32>
    %40 = vector.shape_cast %36 : vector<8x8xf32> to vector<1x8x8xf32>
    %41 = vector.shape_cast %37 : vector<8x8xf32> to vector<1x8x8xf32>
    %42 = vector.shape_cast %38 : vector<8x8xf32> to vector<1x8x8xf32>
    %43 = vector.shape_cast %39 : vector<8x8xf32> to vector<1x8x8xf32>
    %44 = tpu.concatenate %40, %41, %42, %43 in 0 : vector<1x8x8xf32>, vector<1x8x8xf32>, vector<1x8x8xf32>, vector<1x8x8xf32> -> vector<4x8x8xf32>
    "tpu.trace_start"() <{level = 10 : i32, message = "gld,gsd->gls"}> : () -> ()
    %cst_18 = arith.constant dense<0.000000e+00> : vector<4x8x8xf32>
    %45 = tpu.matmul %26, %35, %cst_18 {dimension_numbers = #tpu.dot_dimension_numbers<[2], [2], [1], [1], [0, 0, 0, 1, 1, 1], [0], [0]>} : vector<4x8x8xf32>, vector<4x8x8xf32>, vector<4x8x8xf32> -> vector<4x8x8xf32>
    "tpu.trace_stop"() : () -> ()
    %cst_19 = arith.constant dense<0xFF800000> : vector<4x8xf32>
    %46 = vector.multi_reduction <maximumf>, %45, %cst_19 [2] : vector<4x8x8xf32> to vector<4x8xf32>
    %47 = vector.shape_cast %46 : vector<4x8xf32> to vector<4x8x1xf32>
    %48 = vector.broadcast %47 : vector<4x8x1xf32> to vector<4x8x8xf32>
    %49 = arith.subf %45, %48 : vector<4x8x8xf32>
    %50 = math.exp %49 : vector<4x8x8xf32>
    %cst_20 = arith.constant dense<0.000000e+00> : vector<4x8xf32>
    %51 = vector.multi_reduction <add>, %50, %cst_20 [2] : vector<4x8x8xf32> to vector<4x8xf32>
    %52 = vector.shape_cast %51 : vector<4x8xf32> to vector<4x8x1xf32>
    %53 = tpu.reciprocal %52 {approx = true} : vector<4x8x1xf32> -> vector<4x8x1xf32>
    %54 = vector.broadcast %53 : vector<4x8x1xf32> to vector<4x8x8xf32>
    %55 = arith.mulf %50, %54 : vector<4x8x8xf32>
    "tpu.trace_start"() <{level = 10 : i32, message = "gls,gsd->gld"}> : () -> ()
    %cst_21 = arith.constant dense<0.000000e+00> : vector<4x8x8xf32>
    %56 = tpu.matmul %55, %44, %cst_21 {dimension_numbers = #tpu.dot_dimension_numbers<[2], [1], [1], [2], [0, 0, 0, 1, 1, 2], [0], [0]>} : vector<4x8x8xf32>, vector<4x8x8xf32>, vector<4x8x8xf32> -> vector<4x8x8xf32>
    "tpu.trace_stop"() : () -> ()
    %57 = vector.extract_strided_slice %56 {offsets = [0, 0, 0], sizes = [1, 8, 8], strides = [1, 1, 1]} : vector<4x8x8xf32> to vector<1x8x8xf32>
    %58 = vector.shape_cast %57 : vector<1x8x8xf32> to vector<8x8xf32>
    %59 = vector.extract_strided_slice %56 {offsets = [1, 0, 0], sizes = [1, 8, 8], strides = [1, 1, 1]} : vector<4x8x8xf32> to vector<1x8x8xf32>
    %60 = vector.shape_cast %59 : vector<1x8x8xf32> to vector<8x8xf32>
    %61 = vector.extract_strided_slice %56 {offsets = [2, 0, 0], sizes = [1, 8, 8], strides = [1, 1, 1]} : vector<4x8x8xf32> to vector<1x8x8xf32>
    %62 = vector.shape_cast %61 : vector<1x8x8xf32> to vector<8x8xf32>
    %63 = vector.extract_strided_slice %56 {offsets = [3, 0, 0], sizes = [1, 8, 8], strides = [1, 1, 1]} : vector<4x8x8xf32> to vector<1x8x8xf32>
    %64 = vector.shape_cast %63 : vector<1x8x8xf32> to vector<8x8xf32>
    %65 = tpu.concatenate %58, %60, %62, %64 in 1 : vector<8x8xf32>, vector<8x8xf32>, vector<8x8xf32>, vector<8x8xf32> -> vector<8x32xf32>
    %cst_22 = arith.constant dense<0.000000e+00> : vector<8x32xf32>
    %66 = tpu.matmul %65, %16, %cst_22 {dimension_numbers = #tpu.dot_dimension_numbers<[1], [0], [0], [1], [0, 0, 1, 1], [], []>} : vector<8x32xf32>, vector<32x32xf32>, vector<8x32xf32> -> vector<8x32xf32>
    %67 = vector.broadcast %17 : vector<1x32xf32> to vector<8x32xf32>
    %68 = arith.addf %66, %67 : vector<8x32xf32>
    %69 = arith.addf %68, %3 : vector<8x32xf32>
    %70 = vector.shape_cast %69 : vector<8x32xf32> to vector<1x8x32xf32>
    %71 = vector.extract_strided_slice %70 {offsets = [0, 0, 0], sizes = [1, 1, 32], strides = [1, 1, 1]} : vector<1x8x32xf32> to vector<1x1x32xf32>
    %72 = vector.shape_cast %71 : vector<1x1x32xf32> to vector<1x32xf32>
    %73 = vector.extract_strided_slice %70 {offsets = [0, 1, 0], sizes = [1, 1, 32], strides = [1, 1, 1]} : vector<1x8x32xf32> to vector<1x1x32xf32>
    %74 = vector.shape_cast %73 : vector<1x1x32xf32> to vector<1x32xf32>
    %75 = vector.extract_strided_slice %70 {offsets = [0, 2, 0], sizes = [1, 1, 32], strides = [1, 1, 1]} : vector<1x8x32xf32> to vector<1x1x32xf32>
    %76 = vector.shape_cast %75 : vector<1x1x32xf32> to vector<1x32xf32>
    %77 = vector.extract_strided_slice %70 {offsets = [0, 3, 0], sizes = [1, 1, 32], strides = [1, 1, 1]} : vector<1x8x32xf32> to vector<1x1x32xf32>
    %78 = vector.shape_cast %77 : vector<1x1x32xf32> to vector<1x32xf32>
    %79 = tpu.concatenate %72, %74, %76, %78 in 1 : vector<1x32xf32>, vector<1x32xf32>, vector<1x32xf32>, vector<1x32xf32> -> vector<1x128xf32>
    %80 = vector.extract_strided_slice %70 {offsets = [0, 4, 0], sizes = [1, 1, 32], strides = [1, 1, 1]} : vector<1x8x32xf32> to vector<1x1x32xf32>
    %81 = vector.shape_cast %80 : vector<1x1x32xf32> to vector<1x32xf32>
    %82 = vector.extract_strided_slice %70 {offsets = [0, 5, 0], sizes = [1, 1, 32], strides = [1, 1, 1]} : vector<1x8x32xf32> to vector<1x1x32xf32>
    %83 = vector.shape_cast %82 : vector<1x1x32xf32> to vector<1x32xf32>
    %84 = vector.extract_strided_slice %70 {offsets = [0, 6, 0], sizes = [1, 1, 32], strides = [1, 1, 1]} : vector<1x8x32xf32> to vector<1x1x32xf32>
    %85 = vector.shape_cast %84 : vector<1x1x32xf32> to vector<1x32xf32>
    %86 = vector.extract_strided_slice %70 {offsets = [0, 7, 0], sizes = [1, 1, 32], strides = [1, 1, 1]} : vector<1x8x32xf32> to vector<1x1x32xf32>
    %87 = vector.shape_cast %86 : vector<1x1x32xf32> to vector<1x32xf32>
    %88 = tpu.concatenate %81, %83, %85, %87 in 1 : vector<1x32xf32>, vector<1x32xf32>, vector<1x32xf32>, vector<1x32xf32> -> vector<1x128xf32>
    %89 = vector.shape_cast %79 : vector<1x128xf32> to vector<1x1x128xf32>
    %90 = vector.shape_cast %88 : vector<1x128xf32> to vector<1x1x128xf32>
    %91 = tpu.concatenate %89, %90 in 1 : vector<1x1x128xf32>, vector<1x1x128xf32> -> vector<1x2x128xf32>
    %c0_23 = arith.constant 0 : index
    %c0_24 = arith.constant 0 : index
    %c0_25 = arith.constant 0 : index
    %92 = vector.load %arg9[%c0_23, %c0_24, %c0_25] : memref<1x2x128xf32, #tpu.memory_space<vmem>>, vector<1x2x128xf32>
    tpu.vector_store %arg9[%c0_23, %c0_24, %c0_25], %91 {strides = array<i32>} : memref<1x2x128xf32, #tpu.memory_space<vmem>>, vector<1x2x128xf32>,
    return
  }
  func.func @transform_0(%arg0: i32) -> (i32, i32, i32) {
    %c0_i32 = arith.constant 0 : i32
    %c0_i32_0 = arith.constant 0 : i32
    %c0_i32_1 = arith.constant 0 : i32
    return %arg0, %c0_i32, %c0_i32_0 : i32, i32, i32
  }
  func.func @transform_1(%arg0: i32) -> (i32, i32, i32) {
    %c0_i32 = arith.constant 0 : i32
    %c0_i32_0 = arith.constant 0 : i32
    %c0_i32_1 = arith.constant 0 : i32
    return %arg0, %c0_i32, %c0_i32_0 : i32, i32, i32
  }
  func.func @transform_2(%arg0: i32) -> (i32, i32) {
    %c0_i32 = arith.constant 0 : i32
    %c0_i32_0 = arith.constant 0 : i32
    %c0_i32_1 = arith.constant 0 : i32
    return %c0_i32, %c0_i32_0 : i32, i32
  }
  func.func @transform_3(%arg0: i32) -> (i32, i32) {
    %c0_i32 = arith.constant 0 : i32
    %c0_i32_0 = arith.constant 0 : i32
    %c0_i32_1 = arith.constant 0 : i32
    return %c0_i32, %c0_i32_0 : i32, i32
  }
  func.func @transform_4(%arg0: i32) -> (i32, i32) {
    %c0_i32 = arith.constant 0 : i32
    %c0_i32_0 = arith.constant 0 : i32
    %c0_i32_1 = arith.constant 0 : i32
    return %c0_i32, %c0_i32_0 : i32, i32
  }
  func.func @transform_5(%arg0: i32) -> (i32, i32) {
    %c0_i32 = arith.constant 0 : i32
    %c0_i32_0 = arith.constant 0 : i32
    %c0_i32_1 = arith.constant 0 : i32
    return %c0_i32, %c0_i32_0 : i32, i32
  }
  func.func @transform_6(%arg0: i32) -> (i32, i32) {
    %c0_i32 = arith.constant 0 : i32
    %c0_i32_0 = arith.constant 0 : i32
    %c0_i32_1 = arith.constant 0 : i32
    return %c0_i32, %c0_i32_0 : i32, i32
  }
  func.func @transform_7(%arg0: i32) -> (i32, i32) {
    %c0_i32 = arith.constant 0 : i32
    %c0_i32_0 = arith.constant 0 : i32
    %c0_i32_1 = arith.constant 0 : i32
    return %c0_i32, %c0_i32_0 : i32, i32
  }
  func.func @transform_8(%arg0: i32) -> (i32, i32, i32) {
    %c0_i32 = arith.constant 0 : i32
    %c0_i32_0 = arith.constant 0 : i32
    %c0_i32_1 = arith.constant 0 : i32
    return %arg0, %c0_i32, %c0_i32_0 : i32, i32, i32
  }
}

</mosaic_0001>

<llo_original>
// kernel: _lambda_.1
$region0: #{_lambda_.1}
  #allocation0 [shape = 'u32[]', space=smem, size = 0x4, offset = 0x4, fixed_abs, tag = 'smem constant byte address 0x4 - core index']
  #allocation1 [shape = 'u32[144,128]{1,0:T(1,128)}', space=vmem, size = 0x12000, scoped, tag = 'internal scratch']
  %s0 = inlined_call_operand.vmem [shape: f32[2,8,32], index: 0, kind: input, shape index: {}]
  %s1 = inlined_call_operand.vmem [shape: f32[2,8,32], index: 1, kind: input, shape index: {}]
  %s2 = inlined_call_operand.hbm [shape: f32[32,64], index: 2, kind: input, shape index: {}]
  %s3 = inlined_call_operand.vmem [shape: f32[1,64], index: 3, kind: input, shape index: {}]
  %s4 = inlined_call_operand.vmem [shape: f32[32,32], index: 4, kind: input, shape index: {}]
  %s5 = inlined_call_operand.vmem [shape: f32[1,32], index: 5, kind: input, shape index: {}]
  %s6 = inlined_call_operand.vmem [shape: f32[32,32], index: 6, kind: input, shape index: {}]
  %s7 = inlined_call_operand.vmem [shape: f32[1,32], index: 7, kind: input, shape index: {}]
  %s8 = inlined_call_operand.vmem [shape: f32[2,2,128], index: 8, kind: output, shape index: {}]
  %s9 = sld [smem:[#allocation0]]
  $region69: #{_lambda_.1} parent=0
    _
  %s11 = ssub.s32 1, %s9
  %s12 = scalar_select 0, %s11, %s9
  $region1: #{_lambda_.1} parent=0
    #allocation2 [shape = 'u8[16384]{0}', space=vmem, size = 0x4000, scoped, tag = 'input window, operand 2, single buffered']
    #allocation3 [shape = 's32[2]{0}', space=sflag, size = 0x8, scoped, tag = 'scoped memory for _lambda_.1']
    %13 = vsyncpa [#allocation3], 0
    loop: start=0, step=1, limit=4
    $region2: #{_lambda_.1} parent=1 // loop_pre_header
      _
    $region3: #{_lambda_.1} parent=1 // loop_header
      %s15 = sphi 0, %s19
      %p16 = scmp.ge.s32.totalorder %s15, 4
      %s25 = sphi 0, %s27
      %s28 = sphi 0, %s25
      %s29 = sphi 0, %s28
      %s45 = sphi 0, %s29
      %s51 = sphi 0, %s53
      %s54 = sphi 0, %s51
      %s55 = sphi 0, %s54
      %s71 = sphi 0, %s55
      %s75 = sphi 0, %s75
      %s77 = sphi 0, %s75
      %s78 = sphi 0, %s77
      %s92 = sphi 0, %s78
      %s96 = sphi 0, %s96
      %s98 = sphi 0, %s96
      %s99 = sphi 0, %s98
      %s113 = sphi 0, %s99
      %s117 = sphi 0, %s117
      %s119 = sphi 0, %s117
      %s120 = sphi 0, %s119
      %s134 = sphi 0, %s120
      %s138 = sphi 0, %s138
      %s140 = sphi 0, %s138
      %s141 = sphi 0, %s140
      %s155 = sphi 0, %s141
      %s159 = sphi 0, %s159
      %s161 = sphi 0, %s159
      %s162 = sphi 0, %s161
      %s176 = sphi 0, %s162
      %s180 = sphi 0, %s180
      %s182 = sphi 0, %s180
      %s183 = sphi 0, %s182
      %s197 = sphi 0, %s183
      %s203 = sphi 0, %s205
      %s206 = sphi 0, %s203
      %s207 = sphi 0, %s206
      %s223 = sphi 0, %s207
    $region4: #{_lambda_.1} parent=1 // loop_header_branch
      %18 = sbr.rel (%p16) target = $region8
    $region5: #{_lambda_.1} parent=1 // loop_body
      %s20 = ssub.s32 %s15, 1
      %s21 = ssub.s32 %s15, 2
      %s22 = sadd.s32 %s15, 1
      %s23 = ssub.s32 %s15, %s22
      %p24 = scmp.eq.s32.totalorder %s23, 0
      %s26 = sadd.s32 %s25, 1
      %s27 = scalar_select %p24, %s25, %s26
      %p30 = pneg %p24
      %p31 = scmp.eq.s32.totalorder %s15, 1
      %p32 = por %p30, %p31
      %p33 = scmp.ne.s32.totalorder %s25, %s28
      %p34 = scmp.eq.s32.totalorder %s15, 0
      %p35 = por %p33, %p34
      %p36 = scmp.ne.s32.totalorder %s25, %s28
      %p37 = scmp.eq.s32.totalorder %s20, 1
      %p38 = por %p36, %p37
      %p39 = scmp.ne.s32.totalorder %s28, %s29
      %p40 = scmp.eq.s32.totalorder %s20, 0
      %p41 = por %p39, %p40
      %p42 = scmp.ne.s32.totalorder %s28, %s29
      %p43 = scmp.eq.s32.totalorder %s21, 1
      %p44 = por %p42, %p43
      %p46 = scmp.ne.s32.totalorder %s29, %s45
      %p47 = scmp.eq.s32.totalorder %s21, 0
      %p48 = por %p46, %p47
      %s49 = ssub.s32 %s15, %s22
      %p50 = scmp.eq.s32.totalorder %s49, 0
      %s52 = sadd.s32 %s51, 1
      %s53 = scalar_select %p50, %s51, %s52
      %p56 = pneg %p50
      %p57 = scmp.eq.s32.totalorder %s15, 1
      %p58 = por %p56, %p57
      %p59 = scmp.ne.s32.totalorder %s51, %s54
      %p60 = scmp.eq.s32.totalorder %s15, 0
      %p61 = por %p59, %p60
      %p62 = scmp.ne.s32.totalorder %s51, %s54
      %p63 = scmp.eq.s32.totalorder %s20, 1
      %p64 = por %p62, %p63
      %p65 = scmp.ne.s32.totalorder %s54, %s55
      %p66 = scmp.eq.s32.totalorder %s20, 0
      %p67 = por %p65, %p66
      %p68 = scmp.ne.s32.totalorder %s54, %s55
      %p69 = scmp.eq.s32.totalorder %s21, 1
      %p70 = por %p68, %p69
      %p72 = scmp.ne.s32.totalorder %s55, %s71
      %p73 = scmp.eq.s32.totalorder %s21, 0
      %p74 = por %p72, %p73
      %s76 = sadd.s32 %s75, 1
      %p79 = scmp.eq.s32.totalorder %s15, 1
      %p80 = scmp.ne.s32.totalorder %s75, %s77
      %p81 = scmp.eq.s32.totalorder %s15, 0
      %p82 = por %p80, %p81
      %p83 = scmp.ne.s32.totalorder %s75, %s77
      %p84 = scmp.eq.s32.totalorder %s20, 1
      %p85 = por %p83, %p84
      %p86 = scmp.ne.s32.totalorder %s77, %s78
      %p87 = scmp.eq.s32.totalorder %s20, 0
      %p88 = por %p86, %p87
      %p89 = scmp.ne.s32.totalorder %s77, %s78
      %p90 = scmp.eq.s32.totalorder %s21, 1
      %p91 = por %p89, %p90
      %p93 = scmp.ne.s32.totalorder %s78, %s92
      %p94 = scmp.eq.s32.totalorder %s21, 0
      %p95 = por %p93, %p94
      %s97 = sadd.s32 %s96, 1
      %p100 = scmp.eq.s32.totalorder %s15, 1
      %p101 = scmp.ne.s32.totalorder %s96, %s98
      %p102 = scmp.eq.s32.totalorder %s15, 0
      %p103 = por %p101, %p102
      %p104 = scmp.ne.s32.totalorder %s96, %s98
      %p105 = scmp.eq.s32.totalorder %s20, 1
      %p106 = por %p104, %p105
      %p107 = scmp.ne.s32.totalorder %s98, %s99
      %p108 = scmp.eq.s32.totalorder %s20, 0
      %p109 = por %p107, %p108
      %p110 = scmp.ne.s32.totalorder %s98, %s99
      %p111 = scmp.eq.s32.totalorder %s21, 1
      %p112 = por %p110, %p111
      %p114 = scmp.ne.s32.totalorder %s99, %s113
      %p115 = scmp.eq.s32.totalorder %s21, 0
      %p116 = por %p114, %p115
      %s118 = sadd.s32 %s117, 1
      %p121 = scmp.eq.s32.totalorder %s15, 1
      %p122 = scmp.ne.s32.totalorder %s117, %s119
      %p123 = scmp.eq.s32.totalorder %s15, 0
      %p124 = por %p122, %p123
      %p125 = scmp.ne.s32.totalorder %s117, %s119
      %p126 = scmp.eq.s32.totalorder %s20, 1
      %p127 = por %p125, %p126
      %p128 = scmp.ne.s32.totalorder %s119, %s120
      %p129 = scmp.eq.s32.totalorder %s20, 0
      %p130 = por %p128, %p129
      %p131 = scmp.ne.s32.totalorder %s119, %s120
      %p132 = scmp.eq.s32.totalorder %s21, 1
      %p133 = por %p131, %p132
      %p135 = scmp.ne.s32.totalorder %s120, %s134
      %p136 = scmp.eq.s32.totalorder %s21, 0
      %p137 = por %p135, %p136
      %s139 = sadd.s32 %s138, 1
      %p142 = scmp.eq.s32.totalorder %s15, 1
      %p143 = scmp.ne.s32.totalorder %s138, %s140
      %p144 = scmp.eq.s32.totalorder %s15, 0
      %p145 = por %p143, %p144
      %p146 = scmp.ne.s32.totalorder %s138, %s140
      %p147 = scmp.eq.s32.totalorder %s20, 1
      %p148 = por %p146, %p147
      %p149 = scmp.ne.s32.totalorder %s140, %s141
      %p150 = scmp.eq.s32.totalorder %s20, 0
      %p151 = por %p149, %p150
      %p152 = scmp.ne.s32.totalorder %s140, %s141
      %p153 = scmp.eq.s32.totalorder %s21, 1
      %p154 = por %p152, %p153
      %p156 = scmp.ne.s32.totalorder %s141, %s155
      %p157 = scmp.eq.s32.totalorder %s21, 0
      %p158 = por %p156, %p157
      %s160 = sadd.s32 %s159, 1
      %p163 = scmp.eq.s32.totalorder %s15, 1
      %p164 = scmp.ne.s32.totalorder %s159, %s161
      %p165 = scmp.eq.s32.totalorder %s15, 0
      %p166 = por %p164, %p165
      %p167 = scmp.ne.s32.totalorder %s159, %s161
      %p168 = scmp.eq.s32.totalorder %s20, 1
      %p169 = por %p167, %p168
      %p170 = scmp.ne.s32.totalorder %s161, %s162
      %p171 = scmp.eq.s32.totalorder %s20, 0
      %p172 = por %p170, %p171
      %p173 = scmp.ne.s32.totalorder %s161, %s162
      %p174 = scmp.eq.s32.totalorder %s21, 1
      %p175 = por %p173, %p174
      %p177 = scmp.ne.s32.totalorder %s162, %s176
      %p178 = scmp.eq.s32.totalorder %s21, 0
      %p179 = por %p177, %p178
      %s181 = sadd.s32 %s180, 1
      %p184 = scmp.eq.s32.totalorder %s15, 1
      %p185 = scmp.ne.s32.totalorder %s180, %s182
      %p186 = scmp.eq.s32.totalorder %s15, 0
      %p187 = por %p185, %p186
      %p188 = scmp.ne.s32.totalorder %s180, %s182
      %p189 = scmp.eq.s32.totalorder %s20, 1
      %p190 = por %p188, %p189
      %p191 = scmp.ne.s32.totalorder %s182, %s183
      %p192 = scmp.eq.s32.totalorder %s20, 0
      %p193 = por %p191, %p192
      %p194 = scmp.ne.s32.totalorder %s182, %s183
      %p195 = scmp.eq.s32.totalorder %s21, 1
      %p196 = por %p194, %p195
      %p198 = scmp.ne.s32.totalorder %s183, %s197
      %p199 = scmp.eq.s32.totalorder %s21, 0
      %p200 = por %p198, %p199
      %s201 = ssub.s32 %s15, %s22
      %p202 = scmp.eq.s32.totalorder %s201, 0
      %s204 = sadd.s32 %s203, 1
      %s205 = scalar_select %p202, %s203, %s204
      %p208 = pneg %p202
      %p209 = scmp.eq.s32.totalorder %s15, 1
      %p210 = por %p208, %p209
      %p211 = scmp.ne.s32.totalorder %s203, %s206
      %p212 = scmp.eq.s32.totalorder %s15, 0
      %p213 = por %p211, %p212
      %p214 = scmp.ne.s32.totalorder %s203, %s206
      %p215 = scmp.eq.s32.totalorder %s20, 1
      %p216 = por %p214, %p215
      %p217 = scmp.ne.s32.totalorder %s206, %s207
      %p218 = scmp.eq.s32.totalorder %s20, 0
      %p219 = por %p217, %p218
      %p220 = scmp.ne.s32.totalorder %s206, %s207
      %p221 = scmp.eq.s32.totalorder %s21, 1
      %p222 = por %p220, %p221
      %p224 = scmp.ne.s32.totalorder %s207, %s223
      %p225 = scmp.eq.s32.totalorder %s21, 0
      %p226 = por %p224, %p225
      %p227 = scmp.le.s32.totalorder 1, %s15
      %p228 = scmp.lt.s32.totalorder %s15, 3
      %p229 = pnand %p227, %p228
      %p230 = pneg %p229
      // Predicated region
      $region9: #{_lambda_.1} parent=5 // pred_check
        _
      $region10: #{_lambda_.1} parent=5 // pred_check_branch
        %232 = sbr.rel (%p229) target = $region12
      $region11: #{_lambda_.1} parent=5 // pred_region
        %s233 = ssub.s32 %s15, 1
        // Predicated region
        $region13: #{_lambda_.1} parent=11 // pred_check
          %p234 = pneg %p88
        $region14: #{_lambda_.1} parent=11 // pred_check_branch
          %236 = sbr.rel (%p234) target = $region16
        $region15: #{_lambda_.1} parent=11 // pred_region
          %s238 = ssub.s32 512, 512
          %239 = vsyncadd [#allocation3], %s238
          %s240 = sshll.u32 [#allocation2], 4
          %s241 = int_to_ptr.vmem [resolvable:$true] %s240
          %246 = dma.hbm_to_vmem [thread:$0]  %s2, 512, %s241, [#allocation3], 128, 128, 8
        $region16: #{_lambda_.1} parent=11 // pred_fallthru
          _
        // Predicated region
        $region17: #{_lambda_.1} parent=11 // pred_check
          %p247 = pneg %p109
        $region18: #{_lambda_.1} parent=11 // pred_check_branch
          %249 = sbr.rel (%p247) target = $region20
        $region19: #{_lambda_.1} parent=11 // pred_region
          _
        $region20: #{_lambda_.1} parent=11 // pred_fallthru
          _
        // Predicated region
        $region21: #{_lambda_.1} parent=11 // pred_check
          %p250 = pneg %p130
        $region22: #{_lambda_.1} parent=11 // pred_check_branch
          %252 = sbr.rel (%p250) target = $region24
        $region23: #{_lambda_.1} parent=11 // pred_region
          _
        $region24: #{_lambda_.1} parent=11 // pred_fallthru
          _
        // Predicated region
        $region25: #{_lambda_.1} parent=11 // pred_check
          %p253 = pneg %p151
        $region26: #{_lambda_.1} parent=11 // pred_check_branch
          %255 = sbr.rel (%p253) target = $region28
        $region27: #{_lambda_.1} parent=11 // pred_region
          _
        $region28: #{_lambda_.1} parent=11 // pred_fallthru
          _
        // Predicated region
        $region29: #{_lambda_.1} parent=11 // pred_check
          %p256 = pneg %p172
        $region30: #{_lambda_.1} parent=11 // pred_check_branch
          %258 = sbr.rel (%p256) target = $region32
        $region31: #{_lambda_.1} parent=11 // pred_region
          _
        $region32: #{_lambda_.1} parent=11 // pred_fallthru
          _
        // Predicated region
        $region33: #{_lambda_.1} parent=11 // pred_check
          %p259 = pneg %p193
        $region34: #{_lambda_.1} parent=11 // pred_check_branch
          %261 = sbr.rel (%p259) target = $region36
        $region35: #{_lambda_.1} parent=11 // pred_region
          _
        $region36: #{_lambda_.1} parent=11 // pred_fallthru
          _
      $region12: #{_lambda_.1} parent=5 // pred_fallthru
        _
      %p262 = scmp.lt.s32.totalorder %s15, 2
      // Predicated region
      $region37: #{_lambda_.1} parent=5 // pred_check
        %p263 = pneg %p262
      $region38: #{_lambda_.1} parent=5 // pred_check_branch
        %265 = sbr.rel (%p263) target = $region40
      $region39: #{_lambda_.1} parent=5 // pred_region
        // Predicated region
        $region41: #{_lambda_.1} parent=39 // pred_check
          %p266 = pneg %p35
        $region42: #{_lambda_.1} parent=39 // pred_check_branch
          %268 = sbr.rel (%p266) target = $region44
        $region43: #{_lambda_.1} parent=39 // pred_region
          %p269 = scmp.lt.s32.totalorder %s15, 1
          %s270 = scalar_select %p269, %s15, 1
          %s271 = smul.addr %s270, 8
          %s272 = scalar_lea.vmem %s0, %s271
        $region44: #{_lambda_.1} parent=39 // pred_fallthru
          _
        // Predicated region
        $region45: #{_lambda_.1} parent=39 // pred_check
          %p273 = pneg %p61
        $region46: #{_lambda_.1} parent=39 // pred_check_branch
          %275 = sbr.rel (%p273) target = $region48
        $region47: #{_lambda_.1} parent=39 // pred_region
          %p276 = scmp.lt.s32.totalorder %s15, 1
          %s277 = scalar_select %p276, %s15, 1
          %s278 = smul.addr %s277, 8
          %s279 = scalar_lea.vmem %s1, %s278
        $region48: #{_lambda_.1} parent=39 // pred_fallthru
          _
      $region40: #{_lambda_.1} parent=5 // pred_fallthru
        _
      %p280 = scmp.le.s32.totalorder 1, %s15
      %p281 = scmp.lt.s32.totalorder %s15, 3
      %p282 = pnand %p280, %p281
      %p283 = pneg %p282
      // Predicated region
      $region49: #{_lambda_.1} parent=5 // pred_check
        _
      $region50: #{_lambda_.1} parent=5 // pred_check_branch
        %285 = sbr.rel (%p282) target = $region52
      $region51: #{_lambda_.1} parent=5 // pred_region
        %s286 = ssub.s32 %s15, 1
        // Predicated region
        $region53: #{_lambda_.1} parent=51 // pred_check
          %p287 = pneg %p88
        $region54: #{_lambda_.1} parent=51 // pred_check_branch
          %289 = sbr.rel (%p287) target = $region56
        $region55: #{_lambda_.1} parent=51 // pred_region
          %290 = dma.done [#allocation3], 512
        $region56: #{_lambda_.1} parent=51 // pred_fallthru
          _
        %p291 = scmp.lt.s32.totalorder %s20, 1
        %s292 = scalar_select %p291, %s20, 1
        %s293 = smul.addr %s292, 8
        %s294 = scalar_lea.vmem %s0, %s293
        %p295 = pneg %p41
        %p296 = pneg %p38
        %p297 = scmp.lt.s32.totalorder %s20, 1
        %s298 = scalar_select %p297, %s20, 1
        %s299 = smul.addr %s298, 8
        %s300 = scalar_lea.vmem %s1, %s299
        %p301 = pneg %p67
        %p302 = pneg %p64
        %p303 = pneg %p88
        %p304 = pneg %p85
        %p305 = pneg %p109
        %p306 = pneg %p106
        %p307 = pneg %p130
        %p308 = pneg %p127
        %p309 = pneg %p151
        %p310 = pneg %p148
        %p311 = pneg %p172
        %p312 = pneg %p169
        %p313 = pneg %p193
        %p314 = pneg %p190
        %p315 = pneg %p219
        %p316 = pneg %p216
        %p317 = scmp.lt.s32.totalorder %s20, 1
        %s318 = scalar_select %p317, %s20, 1
        %s319 = smul.addr %s318, 2
        %s320 = scalar_lea.vmem %s8, %s319
        %p321 = scmp.lt.s32.totalorder %s20, 1
        %s322 = scalar_select %p321, %s20, 1
        %s323 = smul.addr %s322, 8
        %s324 = scalar_lea.vmem %s0, %s323
        %p325 = scmp.lt.s32.totalorder %s20, 1
        %s326 = scalar_select %p325, %s20, 1
        %s327 = smul.addr %s326, 8
        %s328 = scalar_lea.vmem %s1, %s327
        %p329 = scmp.lt.s32.totalorder %s20, 1
        %s330 = scalar_select %p329, %s20, 1
        %s331 = smul.addr %s330, 2
        %s332 = scalar_lea.vmem %s8, %s331
        %v333 = vld [vmem:[%s324] sm:$0xff]
        %v334 = vld [vmem:[%s328] sm:$0xff]
        %v335 = vld [vmem:[#allocation2] sm:$0xff]
        %v336 = vld [vmem:[#allocation2 + $0x8] sm:$0xff]
        %v337 = vld [vmem:[#allocation2 + $0x10] sm:$0xff]
        %v338 = vld [vmem:[#allocation2 + $0x18] sm:$0xff]
        %v339 = vld [vmem:[%s3] sm:$0x1]
        %v341 = vlaneseq
        %v342 = vshrl.u32 %v341, 7
        %v343 = vsub.s32 0, %v342
        %v344 = vrot.slane %v339, %v343
        %vm346 = vcmask 261120
        %v348 = vsel %vm346, %v333, 0
        %350 = vmatprep.subr.mxu0 0.0
        %351 = vmatpush1.msra.mxu0 %v335
        %352 = vmatprep.subr.mxu0 0.0
        %353 = vmatpush1.msra.mxu0 %v336
        %354 = vmatprep.subr.mxu0 0.0
        %355 = vmatpush1.msra.mxu0 %v337
        %356 = vmatprep.subr.mxu0 0.0
        %357 = vmatpush1.msra.mxu0 %v338
        %358 = vmatprep.subr.mxu0 0.0
        %359 = vmatpush1.msra.mxu0 0.0
        %360 = vmatprep.subr.mxu0 0.0
        %361 = vmatpush1.msra.mxu0 0.0
        %362 = vmatprep.subr.mxu0 0.0
        %363 = vmatpush1.msra.mxu0 0.0
        %364 = vmatprep.subr.mxu0 0.0
        %365 = vmatpush1.msra.mxu0 0.0
        %366 = vmatprep.subr.mxu0 0.0
        %367 = vmatpush1.msra.mxu0 0.0
        %368 = vmatprep.subr.mxu0 0.0
        %369 = vmatpush1.msra.mxu0 0.0
        %370 = vmatprep.subr.mxu0 0.0
        %371 = vmatpush1.msra.mxu0 0.0
        %372 = vmatprep.subr.mxu0 0.0
        %373 = vmatpush1.msra.mxu0 0.0
        %374 = vmatprep.subr.mxu0 0.0
        %375 = vmatpush1.msra.mxu0 0.0
        %376 = vmatprep.subr.mxu0 0.0
        %377 = vmatpush1.msra.mxu0 0.0
        %378 = vmatprep.subr.mxu0 0.0
        %379 = vmatpush1.msra.mxu0 0.0
        %380 = vmatprep.subr.mxu0 0.0
        %381 = vmatpush1.msra.mxu0 0.0
        %382 = vmatprep.subr.mxu0 0.0
        %383 = vmatpush1.msra.mxu0 0.0
        %384 = vmatprep.subr.mxu0 0.0
        %385 = vmatpush1.msra.mxu0 0.0
        %386 = vmatprep.subr.mxu0 0.0
        %387 = vmatpush1.msra.mxu0 0.0
        %388 = vmatprep.subr.mxu0 0.0
        %389 = vmatpush1.msra.mxu0 0.0
        %390 = vmatprep.subr.mxu0 0.0
        %391 = vmatpush1.msra.mxu0 0.0
        %392 = vmatprep.subr.mxu0 0.0
        %393 = vmatpush1.msra.mxu0 0.0
        %394 = vmatprep.subr.mxu0 0.0
        %395 = vmatpush1.msra.mxu0 0.0
        %396 = vmatprep.subr.mxu0 0.0
        %397 = vmatpush1.msra.mxu0 0.0
        %398 = vmatprep.subr.mxu0 0.0
        %399 = vmatpush1.msra.mxu0 0.0
        %400 = vmatprep.subr.mxu0 0.0
        %401 = vmatpush1.msra.mxu0 0.0
        %402 = vmatprep.subr.mxu0 0.0
        %403 = vmatpush1.msra.mxu0 0.0
        %404 = vmatprep.subr.mxu0 0.0
        %405 = vmatpush1.msra.mxu0 0.0
        %406 = vmatprep.subr.mxu0 0.0
        %407 = vmatpush1.msra.mxu0 0.0
        %408 = vmatprep.subr.mxu0 0.0
        %409 = vmatpush1.msra.mxu0 0.0
        %410 = vmatprep.subr.mxu0 0.0
        %411 = vmatpush1.msra.mxu0 0.0
        %412 = vmatprep.subr.mxu0 0.0
        %413 = vmatpush1.msra.mxu0 0.0
        %414 = vmatprep.mubr.f32.mxu0 0.0
        %415 = vmatmul.mubr.f32.gmra.mrb[0].mxu0 %v348
        %v416 = vpop.f32.mrb[0].mxu0
        %v417 = vadd.f32 %v344, %v416
        %v418 = vpop.f32.mrb[0].mxu0
        %419 = vdwg.mxu0
        %v420 = vld [vmem:[%s4] sm:$0xff]
        %v421 = vld [vmem:[%s4 + $0x8] sm:$0xff]
        %v422 = vld [vmem:[%s4 + $0x10] sm:$0xff]
        %v423 = vld [vmem:[%s4 + $0x18] sm:$0xff]
        %v424 = vld [vmem:[%s5] sm:$0x1]
        %v426 = vlaneseq
        %v427 = vshrl.u32 %v426, 7
        %v428 = vsub.s32 0, %v427
        %v429 = vrot.slane %v424, %v428
        %v432 = vsel %vm346, %v334, 0
        %434 = vmatprep.subr.mxu0 0.0
        %435 = vmatpush1.msra.mxu0 %v420
        %436 = vmatprep.subr.mxu0 0.0
        %437 = vmatpush1.msra.mxu0 %v421
        %438 = vmatprep.subr.mxu0 0.0
        %439 = vmatpush1.msra.mxu0 %v422
        %440 = vmatprep.subr.mxu0 0.0
        %441 = vmatpush1.msra.mxu0 %v423
        %442 = vmatprep.subr.mxu0 0.0
        %443 = vmatpush1.msra.mxu0 0.0
        %444 = vmatprep.subr.mxu0 0.0
        %445 = vmatpush1.msra.mxu0 0.0
        %446 = vmatprep.subr.mxu0 0.0
        %447 = vmatpush1.msra.mxu0 0.0
        %448 = vmatprep.subr.mxu0 0.0
        %449 = vmatpush1.msra.mxu0 0.0
        %450 = vmatprep.subr.mxu0 0.0
        %451 = vmatpush1.msra.mxu0 0.0
        %452 = vmatprep.subr.mxu0 0.0
        %453 = vmatpush1.msra.mxu0 0.0
        %454 = vmatprep.subr.mxu0 0.0
        %455 = vmatpush1.msra.mxu0 0.0
        %456 = vmatprep.subr.mxu0 0.0
        %457 = vmatpush1.msra.mxu0 0.0
        %458 = vmatprep.subr.mxu0 0.0
        %459 = vmatpush1.msra.mxu0 0.0
        %460 = vmatprep.subr.mxu0 0.0
        %461 = vmatpush1.msra.mxu0 0.0
        %462 = vmatprep.subr.mxu0 0.0
        %463 = vmatpush1.msra.mxu0 0.0
        %464 = vmatprep.subr.mxu0 0.0
        %465 = vmatpush1.msra.mxu0 0.0
        %466 = vmatprep.subr.mxu0 0.0
        %467 = vmatpush1.msra.mxu0 0.0
        %468 = vmatprep.subr.mxu0 0.0
        %469 = vmatpush1.msra.mxu0 0.0
        %470 = vmatprep.subr.mxu0 0.0
        %471 = vmatpush1.msra.mxu0 0.0
        %472 = vmatprep.subr.mxu0 0.0
        %473 = vmatpush1.msra.mxu0 0.0
        %474 = vmatprep.subr.mxu0 0.0
        %475 = vmatpush1.msra.mxu0 0.0
        %476 = vmatprep.subr.mxu0 0.0
        %477 = vmatpush1.msra.mxu0 0.0
        %478 = vmatprep.subr.mxu0 0.0
        %479 = vmatpush1.msra.mxu0 0.0
        %480 = vmatprep.subr.mxu0 0.0
        %481 = vmatpush1.msra.mxu0 0.0
        %482 = vmatprep.subr.mxu0 0.0
        %483 = vmatpush1.msra.mxu0 0.0
        %484 = vmatprep.subr.mxu0 0.0
        %485 = vmatpush1.msra.mxu0 0.0
        %486 = vmatprep.subr.mxu0 0.0
        %487 = vmatpush1.msra.mxu0 0.0
        %488 = vmatprep.subr.mxu0 0.0
        %489 = vmatpush1.msra.mxu0 0.0
        %490 = vmatprep.subr.mxu0 0.0
        %491 = vmatpush1.msra.mxu0 0.0
        %492 = vmatprep.subr.mxu0 0.0
        %493 = vmatpush1.msra.mxu0 0.0
        %494 = vmatprep.subr.mxu0 0.0
        %495 = vmatpush1.msra.mxu0 0.0
        %496 = vmatprep.subr.mxu0 0.0
        %497 = vmatpush1.msra.mxu0 0.0
        %498 = vmatprep.mubr.f32.mxu0 0.0
        %499 = vmatmul.mubr.f32.gmra.mrb[0].mxu0 %v432
        %v500 = vpop.f32.mrb[0].mxu0
        %v501 = vadd.f32 %v429, %v500
        %v502 = vpop.f32.mrb[0].mxu0
        %503 = vdwg.mxu0
        %v504 = vld [vmem:[%s6] sm:$0xff]
        %v505 = vld [vmem:[%s6 + $0x8] sm:$0xff]
        %v506 = vld [vmem:[%s6 + $0x10] sm:$0xff]
        %v507 = vld [vmem:[%s6 + $0x18] sm:$0xff]
        %v508 = vld [vmem:[%s7] sm:$0x1]
        %510 = vrot.lane.b32.xlu0 %v417, 120
        %v511 = vpop.permute.xlu0 %510
        %512 = vrot.lane.b32.xlu0 %v417, 112
        %v513 = vpop.permute.xlu0 %512
        %514 = vrot.lane.b32.xlu0 %v417, 104
        %v515 = vpop.permute.xlu0 %514
        %517 = vrot.lane.b32.xlu0 %v501, 120
        %v518 = vpop.permute.xlu0 %517
        %520 = vrot.lane.b32.xlu0 %v501, 112
        %v521 = vpop.permute.xlu0 %520
        %523 = vrot.lane.b32.xlu0 %v501, 104
        %v524 = vpop.permute.xlu0 %523
        %526 = vrot.lane.b32.xlu0 %v417, 96
        %v527 = vpop.permute.xlu0 %526
        %vm528 = vcmask 64512
        %v529 = vsel %vm528, %v417, 0
        %v531 = vsel %vm528, %v527, 0
        %533 = vmatprep.subr.mxu0 0.0
        %534 = vmatpush1.xpose.msra.mxu0 %v531
        %535 = vmatprep.subr.mxu0 0.0
        %536 = vmatpush1.xpose.msra.mxu0 0.0
        %537 = vmatprep.subr.mxu0 0.0
        %538 = vmatpush1.xpose.msra.mxu0 0.0
        %539 = vmatprep.subr.mxu0 0.0
        %540 = vmatpush1.xpose.msra.mxu0 0.0
        %541 = vmatprep.subr.mxu0 0.0
        %542 = vmatpush1.xpose.msra.mxu0 0.0
        %543 = vmatprep.subr.mxu0 0.0
        %544 = vmatpush1.xpose.msra.mxu0 0.0
        %545 = vmatprep.subr.mxu0 0.0
        %546 = vmatpush1.xpose.msra.mxu0 0.0
        %547 = vmatprep.subr.mxu0 0.0
        %548 = vmatpush1.xpose.msra.mxu0 0.0
        %549 = vmatprep.subr.mxu0 0.0
        %550 = vmatpush1.xpose.msra.mxu0 0.0
        %551 = vmatprep.subr.mxu0 0.0
        %552 = vmatpush1.xpose.msra.mxu0 0.0
        %553 = vmatprep.subr.mxu0 0.0
        %554 = vmatpush1.xpose.msra.mxu0 0.0
        %555 = vmatprep.subr.mxu0 0.0
        %556 = vmatpush1.xpose.msra.mxu0 0.0
        %557 = vmatprep.subr.mxu0 0.0
        %558 = vmatpush1.xpose.msra.mxu0 0.0
        %559 = vmatprep.subr.mxu0 0.0
        %560 = vmatpush1.xpose.msra.mxu0 0.0
        %561 = vmatprep.subr.mxu0 0.0
        %562 = vmatpush1.xpose.msra.mxu0 0.0
        %563 = vmatprep.subr.mxu0 0.0
        %564 = vmatpush1.xpose.msra.mxu0 0.0
        %565 = vmatprep.subr.mxu0 0.0
        %566 = vmatpush1.xpose.msra.mxu0 0.0
        %567 = vmatprep.subr.mxu0 0.0
        %568 = vmatpush1.xpose.msra.mxu0 0.0
        %569 = vmatprep.subr.mxu0 0.0
        %570 = vmatpush1.xpose.msra.mxu0 0.0
        %571 = vmatprep.subr.mxu0 0.0
        %572 = vmatpush1.xpose.msra.mxu0 0.0
        %573 = vmatprep.subr.mxu0 0.0
        %574 = vmatpush1.xpose.msra.mxu0 0.0
        %575 = vmatprep.subr.mxu0 0.0
        %576 = vmatpush1.xpose.msra.mxu0 0.0
        %577 = vmatprep.subr.mxu0 0.0
        %578 = vmatpush1.xpose.msra.mxu0 0.0
        %579 = vmatprep.subr.mxu0 0.0
        %580 = vmatpush1.xpose.msra.mxu0 0.0
        %581 = vmatprep.subr.mxu0 0.0
        %582 = vmatpush1.xpose.msra.mxu0 0.0
        %583 = vmatprep.subr.mxu0 0.0
        %584 = vmatpush1.xpose.msra.mxu0 0.0
        %585 = vmatprep.subr.mxu0 0.0
        %586 = vmatpush1.xpose.msra.mxu0 0.0
        %587 = vmatprep.subr.mxu0 0.0
        %588 = vmatpush1.xpose.msra.mxu0 0.0
        %589 = vmatprep.subr.mxu0 0.0
        %590 = vmatpush1.xpose.msra.mxu0 0.0
        %591 = vmatprep.subr.mxu0 0.0
        %592 = vmatpush1.xpose.msra.mxu0 0.0
        %593 = vmatprep.subr.mxu0 0.0
        %594 = vmatpush1.xpose.msra.mxu0 0.0
        %595 = vmatprep.subr.mxu0 0.0
        %596 = vmatpush1.xpose.msra.mxu0 0.0
        %597 = vmatprep.mubr.f32.mxu0 0.0
        %598 = vmatmul.mubr.f32.gmra.mrb[0].mxu0 %v529
        %v599 = vpop.f32.mrb[0].mxu0
        %v600 = vadd.f32 0.0, %v599
        %v601 = vpop.f32.mrb[0].mxu0
        %602 = vdwg.mxu0
        %603 = vrot.lane.b32.xlu0 %v511, 96
        %v604 = vpop.permute.xlu0 %603
        %v605 = vsel %vm528, %v511, 0
        %v607 = vsel %vm528, %v604, 0
        %609 = vmatprep.subr.mxu0 0.0
        %610 = vmatpush1.xpose.msra.mxu0 %v607
        %611 = vmatprep.subr.mxu0 0.0
        %612 = vmatpush1.xpose.msra.mxu0 0.0
        %613 = vmatprep.subr.mxu0 0.0
        %614 = vmatpush1.xpose.msra.mxu0 0.0
        %615 = vmatprep.subr.mxu0 0.0
        %616 = vmatpush1.xpose.msra.mxu0 0.0
        %617 = vmatprep.subr.mxu0 0.0
        %618 = vmatpush1.xpose.msra.mxu0 0.0
        %619 = vmatprep.subr.mxu0 0.0
        %620 = vmatpush1.xpose.msra.mxu0 0.0
        %621 = vmatprep.subr.mxu0 0.0
        %622 = vmatpush1.xpose.msra.mxu0 0.0
        %623 = vmatprep.subr.mxu0 0.0
        %624 = vmatpush1.xpose.msra.mxu0 0.0
        %625 = vmatprep.subr.mxu0 0.0
        %626 = vmatpush1.xpose.msra.mxu0 0.0
        %627 = vmatprep.subr.mxu0 0.0
        %628 = vmatpush1.xpose.msra.mxu0 0.0
        %629 = vmatprep.subr.mxu0 0.0
        %630 = vmatpush1.xpose.msra.mxu0 0.0
        %631 = vmatprep.subr.mxu0 0.0
        %632 = vmatpush1.xpose.msra.mxu0 0.0
        %633 = vmatprep.subr.mxu0 0.0
        %634 = vmatpush1.xpose.msra.mxu0 0.0
        %635 = vmatprep.subr.mxu0 0.0
        %636 = vmatpush1.xpose.msra.mxu0 0.0
        %637 = vmatprep.subr.mxu0 0.0
        %638 = vmatpush1.xpose.msra.mxu0 0.0
        %639 = vmatprep.subr.mxu0 0.0
        %640 = vmatpush1.xpose.msra.mxu0 0.0
        %641 = vmatprep.subr.mxu0 0.0
        %642 = vmatpush1.xpose.msra.mxu0 0.0
        %643 = vmatprep.subr.mxu0 0.0
        %644 = vmatpush1.xpose.msra.mxu0 0.0
        %645 = vmatprep.subr.mxu0 0.0
        %646 = vmatpush1.xpose.msra.mxu0 0.0
        %647 = vmatprep.subr.mxu0 0.0
        %648 = vmatpush1.xpose.msra.mxu0 0.0
        %649 = vmatprep.subr.mxu0 0.0
        %650 = vmatpush1.xpose.msra.mxu0 0.0
        %651 = vmatprep.subr.mxu0 0.0
        %652 = vmatpush1.xpose.msra.mxu0 0.0
        %653 = vmatprep.subr.mxu0 0.0
        %654 = vmatpush1.xpose.msra.mxu0 0.0
        %655 = vmatprep.subr.mxu0 0.0
        %656 = vmatpush1.xpose.msra.mxu0 0.0
        %657 = vmatprep.subr.mxu0 0.0
        %658 = vmatpush1.xpose.msra.mxu0 0.0
        %659 = vmatprep.subr.mxu0 0.0
        %660 = vmatpush1.xpose.msra.mxu0 0.0
        %661 = vmatprep.subr.mxu0 0.0
        %662 = vmatpush1.xpose.msra.mxu0 0.0
        %663 = vmatprep.subr.mxu0 0.0
        %664 = vmatpush1.xpose.msra.mxu0 0.0
        %665 = vmatprep.subr.mxu0 0.0
        %666 = vmatpush1.xpose.msra.mxu0 0.0
        %667 = vmatprep.subr.mxu0 0.0
        %668 = vmatpush1.xpose.msra.mxu0 0.0
        %669 = vmatprep.subr.mxu0 0.0
        %670 = vmatpush1.xpose.msra.mxu0 0.0
        %671 = vmatprep.subr.mxu0 0.0
        %672 = vmatpush1.xpose.msra.mxu0 0.0
        %673 = vmatprep.mubr.f32.mxu0 0.0
        %674 = vmatmul.mubr.f32.gmra.mrb[0].mxu0 %v605
        %v675 = vpop.f32.mrb[0].mxu0
        %v676 = vadd.f32 0.0, %v675
        %v677 = vpop.f32.mrb[0].mxu0
        %678 = vdwg.mxu0
        %679 = vrot.lane.b32.xlu0 %v513, 96
        %v680 = vpop.permute.xlu0 %679
        %v681 = vsel %vm528, %v513, 0
        %v683 = vsel %vm528, %v680, 0
        %685 = vmatprep.subr.mxu0 0.0
        %686 = vmatpush1.xpose.msra.mxu0 %v683
        %687 = vmatprep.subr.mxu0 0.0
        %688 = vmatpush1.xpose.msra.mxu0 0.0
        %689 = vmatprep.subr.mxu0 0.0
        %690 = vmatpush1.xpose.msra.mxu0 0.0
        %691 = vmatprep.subr.mxu0 0.0
        %692 = vmatpush1.xpose.msra.mxu0 0.0
        %693 = vmatprep.subr.mxu0 0.0
        %694 = vmatpush1.xpose.msra.mxu0 0.0
        %695 = vmatprep.subr.mxu0 0.0
        %696 = vmatpush1.xpose.msra.mxu0 0.0
        %697 = vmatprep.subr.mxu0 0.0
        %698 = vmatpush1.xpose.msra.mxu0 0.0
        %699 = vmatprep.subr.mxu0 0.0
        %700 = vmatpush1.xpose.msra.mxu0 0.0
        %701 = vmatprep.subr.mxu0 0.0
        %702 = vmatpush1.xpose.msra.mxu0 0.0
        %703 = vmatprep.subr.mxu0 0.0
        %704 = vmatpush1.xpose.msra.mxu0 0.0
        %705 = vmatprep.subr.mxu0 0.0
        %706 = vmatpush1.xpose.msra.mxu0 0.0
        %707 = vmatprep.subr.mxu0 0.0
        %708 = vmatpush1.xpose.msra.mxu0 0.0
        %709 = vmatprep.subr.mxu0 0.0
        %710 = vmatpush1.xpose.msra.mxu0 0.0
        %711 = vmatprep.subr.mxu0 0.0
        %712 = vmatpush1.xpose.msra.mxu0 0.0
        %713 = vmatprep.subr.mxu0 0.0
        %714 = vmatpush1.xpose.msra.mxu0 0.0
        %715 = vmatprep.subr.mxu0 0.0
        %716 = vmatpush1.xpose.msra.mxu0 0.0
        %717 = vmatprep.subr.mxu0 0.0
        %718 = vmatpush1.xpose.msra.mxu0 0.0
        %719 = vmatprep.subr.mxu0 0.0
        %720 = vmatpush1.xpose.msra.mxu0 0.0
        %721 = vmatprep.subr.mxu0 0.0
        %722 = vmatpush1.xpose.msra.mxu0 0.0
        %723 = vmatprep.subr.mxu0 0.0
        %724 = vmatpush1.xpose.msra.mxu0 0.0
        %725 = vmatprep.subr.mxu0 0.0
        %726 = vmatpush1.xpose.msra.mxu0 0.0
        %727 = vmatprep.subr.mxu0 0.0
        %728 = vmatpush1.xpose.msra.mxu0 0.0
        %729 = vmatprep.subr.mxu0 0.0
        %730 = vmatpush1.xpose.msra.mxu0 0.0
        %731 = vmatprep.subr.mxu0 0.0
        %732 = vmatpush1.xpose.msra.mxu0 0.0
        %733 = vmatprep.subr.mxu0 0.0
        %734 = vmatpush1.xpose.msra.mxu0 0.0
        %735 = vmatprep.subr.mxu0 0.0
        %736 = vmatpush1.xpose.msra.mxu0 0.0
        %737 = vmatprep.subr.mxu0 0.0
        %738 = vmatpush1.xpose.msra.mxu0 0.0
        %739 = vmatprep.subr.mxu0 0.0
        %740 = vmatpush1.xpose.msra.mxu0 0.0
        %741 = vmatprep.subr.mxu0 0.0
        %742 = vmatpush1.xpose.msra.mxu0 0.0
        %743 = vmatprep.subr.mxu0 0.0
        %744 = vmatpush1.xpose.msra.mxu0 0.0
        %745 = vmatprep.subr.mxu0 0.0
        %746 = vmatpush1.xpose.msra.mxu0 0.0
        %747 = vmatprep.subr.mxu0 0.0
        %748 = vmatpush1.xpose.msra.mxu0 0.0
        %749 = vmatprep.mubr.f32.mxu0 0.0
        %750 = vmatmul.mubr.f32.gmra.mrb[0].mxu0 %v681
        %v751 = vpop.f32.mrb[0].mxu0
        %v752 = vadd.f32 0.0, %v751
        %v753 = vpop.f32.mrb[0].mxu0
        %754 = vdwg.mxu0
        %755 = vrot.lane.b32.xlu0 %v515, 96
        %v756 = vpop.permute.xlu0 %755
        %v757 = vsel %vm528, %v515, 0
        %v759 = vsel %vm528, %v756, 0
        %761 = vmatprep.subr.mxu0 0.0
        %762 = vmatpush1.xpose.msra.mxu0 %v759
        %763 = vmatprep.subr.mxu0 0.0
        %764 = vmatpush1.xpose.msra.mxu0 0.0
        %765 = vmatprep.subr.mxu0 0.0
        %766 = vmatpush1.xpose.msra.mxu0 0.0
        %767 = vmatprep.subr.mxu0 0.0
        %768 = vmatpush1.xpose.msra.mxu0 0.0
        %769 = vmatprep.subr.mxu0 0.0
        %770 = vmatpush1.xpose.msra.mxu0 0.0
        %771 = vmatprep.subr.mxu0 0.0
        %772 = vmatpush1.xpose.msra.mxu0 0.0
        %773 = vmatprep.subr.mxu0 0.0
        %774 = vmatpush1.xpose.msra.mxu0 0.0
        %775 = vmatprep.subr.mxu0 0.0
        %776 = vmatpush1.xpose.msra.mxu0 0.0
        %777 = vmatprep.subr.mxu0 0.0
        %778 = vmatpush1.xpose.msra.mxu0 0.0
        %779 = vmatprep.subr.mxu0 0.0
        %780 = vmatpush1.xpose.msra.mxu0 0.0
        %781 = vmatprep.subr.mxu0 0.0
        %782 = vmatpush1.xpose.msra.mxu0 0.0
        %783 = vmatprep.subr.mxu0 0.0
        %784 = vmatpush1.xpose.msra.mxu0 0.0
        %785 = vmatprep.subr.mxu0 0.0
        %786 = vmatpush1.xpose.msra.mxu0 0.0
        %787 = vmatprep.subr.mxu0 0.0
        %788 = vmatpush1.xpose.msra.mxu0 0.0
        %789 = vmatprep.subr.mxu0 0.0
        %790 = vmatpush1.xpose.msra.mxu0 0.0
        %791 = vmatprep.subr.mxu0 0.0
        %792 = vmatpush1.xpose.msra.mxu0 0.0
        %793 = vmatprep.subr.mxu0 0.0
        %794 = vmatpush1.xpose.msra.mxu0 0.0
        %795 = vmatprep.subr.mxu0 0.0
        %796 = vmatpush1.xpose.msra.mxu0 0.0
        %797 = vmatprep.subr.mxu0 0.0
        %798 = vmatpush1.xpose.msra.mxu0 0.0
        %799 = vmatprep.subr.mxu0 0.0
        %800 = vmatpush1.xpose.msra.mxu0 0.0
        %801 = vmatprep.subr.mxu0 0.0
        %802 = vmatpush1.xpose.msra.mxu0 0.0
        %803 = vmatprep.subr.mxu0 0.0
        %804 = vmatpush1.xpose.msra.mxu0 0.0
        %805 = vmatprep.subr.mxu0 0.0
        %806 = vmatpush1.xpose.msra.mxu0 0.0
        %807 = vmatprep.subr.mxu0 0.0
        %808 = vmatpush1.xpose.msra.mxu0 0.0
        %809 = vmatprep.subr.mxu0 0.0
        %810 = vmatpush1.xpose.msra.mxu0 0.0
        %811 = vmatprep.subr.mxu0 0.0
        %812 = vmatpush1.xpose.msra.mxu0 0.0
        %813 = vmatprep.subr.mxu0 0.0
        %814 = vmatpush1.xpose.msra.mxu0 0.0
        %815 = vmatprep.subr.mxu0 0.0
        %816 = vmatpush1.xpose.msra.mxu0 0.0
        %817 = vmatprep.subr.mxu0 0.0
        %818 = vmatpush1.xpose.msra.mxu0 0.0
        %819 = vmatprep.subr.mxu0 0.0
        %820 = vmatpush1.xpose.msra.mxu0 0.0
        %821 = vmatprep.subr.mxu0 0.0
        %822 = vmatpush1.xpose.msra.mxu0 0.0
        %823 = vmatprep.subr.mxu0 0.0
        %824 = vmatpush1.xpose.msra.mxu0 0.0
        %825 = vmatprep.mubr.f32.mxu0 0.0
        %826 = vmatmul.mubr.f32.gmra.mrb[0].mxu0 %v757
        %v827 = vpop.f32.mrb[0].mxu0
        %v828 = vadd.f32 0.0, %v827
        %v829 = vpop.f32.mrb[0].mxu0
        %830 = vdwg.mxu0
        %v831 = vsel %vm528, %v600, -inf
        %832 = vmax.xlane.f32.xlu0 %v831
        %v833 = vpop.xlane.xlu0 %832
        %v834 = vsel %vm528, %v676, -inf
        %835 = vmax.xlane.f32.xlu0 %v834
        %v836 = vpop.xlane.xlu0 %835
        %v837 = vsel %vm528, %v752, -inf
        %838 = vmax.xlane.f32.xlu0 %v837
        %v839 = vpop.xlane.xlu0 %838
        %v840 = vsel %vm528, %v828, -inf
        %841 = vmax.xlane.f32.xlu0 %v840
        %v842 = vpop.xlane.xlu0 %841
        %v843 = vsub.f32 %v600, %v833
        %v844 = vsub.f32 %v676, %v836
        %v845 = vsub.f32 %v752, %v839
        %v846 = vsub.f32 %v828, %v842
        %v847 = vmul.f32 %v843, 1.442695
        %v848 = vpow.pop %v847
        %v849 = vmul.f32 %v844, 1.442695
        %v850 = vpow.pop %v849
        %v851 = vmul.f32 %v845, 1.442695
        %v852 = vpow.pop %v851
        %v853 = vmul.f32 %v846, 1.442695
        %v854 = vpow.pop %v853
        %v855 = vsel %vm528, %v848, 0.0
        %856 = vadd.xlane.f32.xlu0 %v855
        %v857 = vpop.xlane.xlu0 %856
        %v858 = vsel %vm528, %v850, 0.0
        %859 = vadd.xlane.f32.xlu0 %v858
        %v860 = vpop.xlane.xlu0 %859
        %v861 = vsel %vm528, %v852, 0.0
        %862 = vadd.xlane.f32.xlu0 %v861
        %v863 = vpop.xlane.xlu0 %862
        %v864 = vsel %vm528, %v854, 0.0
        %865 = vadd.xlane.f32.xlu0 %v864
        %v866 = vpop.xlane.xlu0 %865
        %v867 = vrcp.pop %v857
        %v868 = vrcp.pop %v860
        %v869 = vrcp.pop %v863
        %v870 = vrcp.pop %v866
        %v871 = vmul.f32 %v848, %v867
        %v872 = vmul.f32 %v850, %v868
        %v873 = vmul.f32 %v852, %v869
        %v874 = vmul.f32 %v854, %v870
        %v876 = vsel %vm528, %v871, 0
        %878 = vmatprep.subr.mxu0 0.0
        %879 = vmatpush1.msra.mxu0 %v501
        %880 = vmatprep.subr.mxu0 0.0
        %881 = vmatpush1.msra.mxu0 0.0
        %882 = vmatprep.subr.mxu0 0.0
        %883 = vmatpush1.msra.mxu0 0.0
        %884 = vmatprep.subr.mxu0 0.0
        %885 = vmatpush1.msra.mxu0 0.0
        %886 = vmatprep.subr.mxu0 0.0
        %887 = vmatpush1.msra.mxu0 0.0
        %888 = vmatprep.subr.mxu0 0.0
        %889 = vmatpush1.msra.mxu0 0.0
        %890 = vmatprep.subr.mxu0 0.0
        %891 = vmatpush1.msra.mxu0 0.0
        %892 = vmatprep.subr.mxu0 0.0
        %893 = vmatpush1.msra.mxu0 0.0
        %894 = vmatprep.subr.mxu0 0.0
        %895 = vmatpush1.msra.mxu0 0.0
        %896 = vmatprep.subr.mxu0 0.0
        %897 = vmatpush1.msra.mxu0 0.0
        %898 = vmatprep.subr.mxu0 0.0
        %899 = vmatpush1.msra.mxu0 0.0
        %900 = vmatprep.subr.mxu0 0.0
        %901 = vmatpush1.msra.mxu0 0.0
        %902 = vmatprep.subr.mxu0 0.0
        %903 = vmatpush1.msra.mxu0 0.0
        %904 = vmatprep.subr.mxu0 0.0
        %905 = vmatpush1.msra.mxu0 0.0
        %906 = vmatprep.subr.mxu0 0.0
        %907 = vmatpush1.msra.mxu0 0.0
        %908 = vmatprep.subr.mxu0 0.0
        %909 = vmatpush1.msra.mxu0 0.0
        %910 = vmatprep.subr.mxu0 0.0
        %911 = vmatpush1.msra.mxu0 0.0
        %912 = vmatprep.subr.mxu0 0.0
        %913 = vmatpush1.msra.mxu0 0.0
        %914 = vmatprep.subr.mxu0 0.0
        %915 = vmatpush1.msra.mxu0 0.0
        %916 = vmatprep.subr.mxu0 0.0
        %917 = vmatpush1.msra.mxu0 0.0
        %918 = vmatprep.subr.mxu0 0.0
        %919 = vmatpush1.msra.mxu0 0.0
        %920 = vmatprep.subr.mxu0 0.0
        %921 = vmatpush1.msra.mxu0 0.0
        %922 = vmatprep.subr.mxu0 0.0
        %923 = vmatpush1.msra.mxu0 0.0
        %924 = vmatprep.subr.mxu0 0.0
        %925 = vmatpush1.msra.mxu0 0.0
        %926 = vmatprep.subr.mxu0 0.0
        %927 = vmatpush1.msra.mxu0 0.0
        %928 = vmatprep.subr.mxu0 0.0
        %929 = vmatpush1.msra.mxu0 0.0
        %930 = vmatprep.subr.mxu0 0.0
        %931 = vmatpush1.msra.mxu0 0.0
        %932 = vmatprep.subr.mxu0 0.0
        %933 = vmatpush1.msra.mxu0 0.0
        %934 = vmatprep.subr.mxu0 0.0
        %935 = vmatpush1.msra.mxu0 0.0
        %936 = vmatprep.subr.mxu0 0.0
        %937 = vmatpush1.msra.mxu0 0.0
        %938 = vmatprep.subr.mxu0 0.0
        %939 = vmatpush1.msra.mxu0 0.0
        %940 = vmatprep.subr.mxu0 0.0
        %941 = vmatpush1.msra.mxu0 0.0
        %942 = vmatprep.mubr.f32.mxu0 0.0
        %943 = vmatmul.mubr.f32.gmra.mrb[0].mxu0 %v876
        %v944 = vpop.f32.mrb[0].mxu0
        %v945 = vadd.f32 0.0, %v944
        %v946 = vpop.f32.mrb[0].mxu0
        %947 = vdwg.mxu0
        %v949 = vsel %vm528, %v872, 0
        %951 = vmatprep.subr.mxu0 0.0
        %952 = vmatpush1.msra.mxu0 %v518
        %953 = vmatprep.subr.mxu0 0.0
        %954 = vmatpush1.msra.mxu0 0.0
        %955 = vmatprep.subr.mxu0 0.0
        %956 = vmatpush1.msra.mxu0 0.0
        %957 = vmatprep.subr.mxu0 0.0
        %958 = vmatpush1.msra.mxu0 0.0
        %959 = vmatprep.subr.mxu0 0.0
        %960 = vmatpush1.msra.mxu0 0.0
        %961 = vmatprep.subr.mxu0 0.0
        %962 = vmatpush1.msra.mxu0 0.0
        %963 = vmatprep.subr.mxu0 0.0
        %964 = vmatpush1.msra.mxu0 0.0
        %965 = vmatprep.subr.mxu0 0.0
        %966 = vmatpush1.msra.mxu0 0.0
        %967 = vmatprep.subr.mxu0 0.0
        %968 = vmatpush1.msra.mxu0 0.0
        %969 = vmatprep.subr.mxu0 0.0
        %970 = vmatpush1.msra.mxu0 0.0
        %971 = vmatprep.subr.mxu0 0.0
        %972 = vmatpush1.msra.mxu0 0.0
        %973 = vmatprep.subr.mxu0 0.0
        %974 = vmatpush1.msra.mxu0 0.0
        %975 = vmatprep.subr.mxu0 0.0
        %976 = vmatpush1.msra.mxu0 0.0
        %977 = vmatprep.subr.mxu0 0.0
        %978 = vmatpush1.msra.mxu0 0.0
        %979 = vmatprep.subr.mxu0 0.0
        %980 = vmatpush1.msra.mxu0 0.0
        %981 = vmatprep.subr.mxu0 0.0
        %982 = vmatpush1.msra.mxu0 0.0
        %983 = vmatprep.subr.mxu0 0.0
        %984 = vmatpush1.msra.mxu0 0.0
        %985 = vmatprep.subr.mxu0 0.0
        %986 = vmatpush1.msra.mxu0 0.0
        %987 = vmatprep.subr.mxu0 0.0
        %988 = vmatpush1.msra.mxu0 0.0
        %989 = vmatprep.subr.mxu0 0.0
        %990 = vmatpush1.msra.mxu0 0.0
        %991 = vmatprep.subr.mxu0 0.0
        %992 = vmatpush1.msra.mxu0 0.0
        %993 = vmatprep.subr.mxu0 0.0
        %994 = vmatpush1.msra.mxu0 0.0
        %995 = vmatprep.subr.mxu0 0.0
        %996 = vmatpush1.msra.mxu0 0.0
        %997 = vmatprep.subr.mxu0 0.0
        %998 = vmatpush1.msra.mxu0 0.0
        %999 = vmatprep.subr.mxu0 0.0
        %1000 = vmatpush1.msra.mxu0 0.0
        %1001 = vmatprep.subr.mxu0 0.0
        %1002 = vmatpush1.msra.mxu0 0.0
        %1003 = vmatprep.subr.mxu0 0.0
        %1004 = vmatpush1.msra.mxu0 0.0
        %1005 = vmatprep.subr.mxu0 0.0
        %1006 = vmatpush1.msra.mxu0 0.0
        %1007 = vmatprep.subr.mxu0 0.0
        %1008 = vmatpush1.msra.mxu0 0.0
        %1009 = vmatprep.subr.mxu0 0.0
        %1010 = vmatpush1.msra.mxu0 0.0
        %1011 = vmatprep.subr.mxu0 0.0
        %1012 = vmatpush1.msra.mxu0 0.0
        %1013 = vmatprep.subr.mxu0 0.0
        %1014 = vmatpush1.msra.mxu0 0.0
        %1015 = vmatprep.mubr.f32.mxu0 0.0
        %1016 = vmatmul.mubr.f32.gmra.mrb[0].mxu0 %v949
        %v1017 = vpop.f32.mrb[0].mxu0
        %v1018 = vadd.f32 0.0, %v1017
        %v1019 = vpop.f32.mrb[0].mxu0
        %1020 = vdwg.mxu0
        %v1022 = vsel %vm528, %v873, 0
        %1024 = vmatprep.subr.mxu0 0.0
        %1025 = vmatpush1.msra.mxu0 %v521
        %1026 = vmatprep.subr.mxu0 0.0
        %1027 = vmatpush1.msra.mxu0 0.0
        %1028 = vmatprep.subr.mxu0 0.0
        %1029 = vmatpush1.msra.mxu0 0.0
        %1030 = vmatprep.subr.mxu0 0.0
        %1031 = vmatpush1.msra.mxu0 0.0
        %1032 = vmatprep.subr.mxu0 0.0
        %1033 = vmatpush1.msra.mxu0 0.0
        %1034 = vmatprep.subr.mxu0 0.0
        %1035 = vmatpush1.msra.mxu0 0.0
        %1036 = vmatprep.subr.mxu0 0.0
        %1037 = vmatpush1.msra.mxu0 0.0
        %1038 = vmatprep.subr.mxu0 0.0
        %1039 = vmatpush1.msra.mxu0 0.0
        %1040 = vmatprep.subr.mxu0 0.0
        %1041 = vmatpush1.msra.mxu0 0.0
        %1042 = vmatprep.subr.mxu0 0.0
        %1043 = vmatpush1.msra.mxu0 0.0
        %1044 = vmatprep.subr.mxu0 0.0
        %1045 = vmatpush1.msra.mxu0 0.0
        %1046 = vmatprep.subr.mxu0 0.0
        %1047 = vmatpush1.msra.mxu0 0.0
        %1048 = vmatprep.subr.mxu0 0.0
        %1049 = vmatpush1.msra.mxu0 0.0
        %1050 = vmatprep.subr.mxu0 0.0
        %1051 = vmatpush1.msra.mxu0 0.0
        %1052 = vmatprep.subr.mxu0 0.0
        %1053 = vmatpush1.msra.mxu0 0.0
        %1054 = vmatprep.subr.mxu0 0.0
        %1055 = vmatpush1.msra.mxu0 0.0
        %1056 = vmatprep.subr.mxu0 0.0
        %1057 = vmatpush1.msra.mxu0 0.0
        %1058 = vmatprep.subr.mxu0 0.0
        %1059 = vmatpush1.msra.mxu0 0.0
        %1060 = vmatprep.subr.mxu0 0.0
        %1061 = vmatpush1.msra.mxu0 0.0
        %1062 = vmatprep.subr.mxu0 0.0
        %1063 = vmatpush1.msra.mxu0 0.0
        %1064 = vmatprep.subr.mxu0 0.0
        %1065 = vmatpush1.msra.mxu0 0.0
        %1066 = vmatprep.subr.mxu0 0.0
        %1067 = vmatpush1.msra.mxu0 0.0
        %1068 = vmatprep.subr.mxu0 0.0
        %1069 = vmatpush1.msra.mxu0 0.0
        %1070 = vmatprep.subr.mxu0 0.0
        %1071 = vmatpush1.msra.mxu0 0.0
        %1072 = vmatprep.subr.mxu0 0.0
        %1073 = vmatpush1.msra.mxu0 0.0
        %1074 = vmatprep.subr.mxu0 0.0
        %1075 = vmatpush1.msra.mxu0 0.0
        %1076 = vmatprep.subr.mxu0 0.0
        %1077 = vmatpush1.msra.mxu0 0.0
        %1078 = vmatprep.subr.mxu0 0.0
        %1079 = vmatpush1.msra.mxu0 0.0
        %1080 = vmatprep.subr.mxu0 0.0
        %1081 = vmatpush1.msra.mxu0 0.0
        %1082 = vmatprep.subr.mxu0 0.0
        %1083 = vmatpush1.msra.mxu0 0.0
        %1084 = vmatprep.subr.mxu0 0.0
        %1085 = vmatpush1.msra.mxu0 0.0
        %1086 = vmatprep.subr.mxu0 0.0
        %1087 = vmatpush1.msra.mxu0 0.0
        %1088 = vmatprep.mubr.f32.mxu0 0.0
        %1089 = vmatmul.mubr.f32.gmra.mrb[0].mxu0 %v1022
        %v1090 = vpop.f32.mrb[0].mxu0
        %v1091 = vadd.f32 0.0, %v1090
        %v1092 = vpop.f32.mrb[0].mxu0
        %1093 = vdwg.mxu0
        %v1095 = vsel %vm528, %v874, 0
        %1097 = vmatprep.subr.mxu0 0.0
        %1098 = vmatpush1.msra.mxu0 %v524
        %1099 = vmatprep.subr.mxu0 0.0
        %1100 = vmatpush1.msra.mxu0 0.0
        %1101 = vmatprep.subr.mxu0 0.0
        %1102 = vmatpush1.msra.mxu0 0.0
        %1103 = vmatprep.subr.mxu0 0.0
        %1104 = vmatpush1.msra.mxu0 0.0
        %1105 = vmatprep.subr.mxu0 0.0
        %1106 = vmatpush1.msra.mxu0 0.0
        %1107 = vmatprep.subr.mxu0 0.0
        %1108 = vmatpush1.msra.mxu0 0.0
        %1109 = vmatprep.subr.mxu0 0.0
        %1110 = vmatpush1.msra.mxu0 0.0
        %1111 = vmatprep.subr.mxu0 0.0
        %1112 = vmatpush1.msra.mxu0 0.0
        %1113 = vmatprep.subr.mxu0 0.0
        %1114 = vmatpush1.msra.mxu0 0.0
        %1115 = vmatprep.subr.mxu0 0.0
        %1116 = vmatpush1.msra.mxu0 0.0
        %1117 = vmatprep.subr.mxu0 0.0
        %1118 = vmatpush1.msra.mxu0 0.0
        %1119 = vmatprep.subr.mxu0 0.0
        %1120 = vmatpush1.msra.mxu0 0.0
        %1121 = vmatprep.subr.mxu0 0.0
        %1122 = vmatpush1.msra.mxu0 0.0
        %1123 = vmatprep.subr.mxu0 0.0
        %1124 = vmatpush1.msra.mxu0 0.0
        %1125 = vmatprep.subr.mxu0 0.0
        %1126 = vmatpush1.msra.mxu0 0.0
        %1127 = vmatprep.subr.mxu0 0.0
        %1128 = vmatpush1.msra.mxu0 0.0
        %1129 = vmatprep.subr.mxu0 0.0
        %1130 = vmatpush1.msra.mxu0 0.0
        %1131 = vmatprep.subr.mxu0 0.0
        %1132 = vmatpush1.msra.mxu0 0.0
        %1133 = vmatprep.subr.mxu0 0.0
        %1134 = vmatpush1.msra.mxu0 0.0
        %1135 = vmatprep.subr.mxu0 0.0
        %1136 = vmatpush1.msra.mxu0 0.0
        %1137 = vmatprep.subr.mxu0 0.0
        %1138 = vmatpush1.msra.mxu0 0.0
        %1139 = vmatprep.subr.mxu0 0.0
        %1140 = vmatpush1.msra.mxu0 0.0
        %1141 = vmatprep.subr.mxu0 0.0
        %1142 = vmatpush1.msra.mxu0 0.0
        %1143 = vmatprep.subr.mxu0 0.0
        %1144 = vmatpush1.msra.mxu0 0.0
        %1145 = vmatprep.subr.mxu0 0.0
        %1146 = vmatpush1.msra.mxu0 0.0
        %1147 = vmatprep.subr.mxu0 0.0
        %1148 = vmatpush1.msra.mxu0 0.0
        %1149 = vmatprep.subr.mxu0 0.0
        %1150 = vmatpush1.msra.mxu0 0.0
        %1151 = vmatprep.subr.mxu0 0.0
        %1152 = vmatpush1.msra.mxu0 0.0
        %1153 = vmatprep.subr.mxu0 0.0
        %1154 = vmatpush1.msra.mxu0 0.0
        %1155 = vmatprep.subr.mxu0 0.0
        %1156 = vmatpush1.msra.mxu0 0.0
        %1157 = vmatprep.subr.mxu0 0.0
        %1158 = vmatpush1.msra.mxu0 0.0
        %1159 = vmatprep.subr.mxu0 0.0
        %1160 = vmatpush1.msra.mxu0 0.0
        %1161 = vmatprep.mubr.f32.mxu0 0.0
        %1162 = vmatmul.mubr.f32.gmra.mrb[0].mxu0 %v1095
        %v1163 = vpop.f32.mrb[0].mxu0
        %v1164 = vadd.f32 0.0, %v1163
        %v1165 = vpop.f32.mrb[0].mxu0
        %1166 = vdwg.mxu0
        %1168 = vrot.lane.b32.xlu0 %v1018, 8
        %v1169 = vpop.permute.xlu0 %1168
        %1172 = vrot.lane.b32.xlu0 %v1091, 16
        %v1173 = vpop.permute.xlu0 %1172
        %1176 = vrot.lane.b32.xlu0 %v1164, 24
        %v1177 = vpop.permute.xlu0 %1176
        %v1179 = vsel %vm528, %v945, %v1169
        %vm1180 = vcmask 130048
        %v1181 = vsel %vm1180, %v1179, %v1173
        %vm1182 = vcmask 195584
        %v1183 = vsel %vm1182, %v1181, %v1177
        %v1185 = vlaneseq
        %v1186 = vshrl.u32 %v1185, 7
        %v1187 = vsub.s32 0, %v1186
        %v1188 = vrot.slane %v508, %v1187
        %v1191 = vsel %vm346, %v1183, 0
        %1193 = vmatprep.subr.mxu0 0.0
        %1194 = vmatpush1.msra.mxu0 %v504
        %1195 = vmatprep.subr.mxu0 0.0
        %1196 = vmatpush1.msra.mxu0 %v505
        %1197 = vmatprep.subr.mxu0 0.0
        %1198 = vmatpush1.msra.mxu0 %v506
        %1199 = vmatprep.subr.mxu0 0.0
        %1200 = vmatpush1.msra.mxu0 %v507
        %1201 = vmatprep.subr.mxu0 0.0
        %1202 = vmatpush1.msra.mxu0 0.0
        %1203 = vmatprep.subr.mxu0 0.0
        %1204 = vmatpush1.msra.mxu0 0.0
        %1205 = vmatprep.subr.mxu0 0.0
        %1206 = vmatpush1.msra.mxu0 0.0
        %1207 = vmatprep.subr.mxu0 0.0
        %1208 = vmatpush1.msra.mxu0 0.0
        %1209 = vmatprep.subr.mxu0 0.0
        %1210 = vmatpush1.msra.mxu0 0.0
        %1211 = vmatprep.subr.mxu0 0.0
        %1212 = vmatpush1.msra.mxu0 0.0
        %1213 = vmatprep.subr.mxu0 0.0
        %1214 = vmatpush1.msra.mxu0 0.0
        %1215 = vmatprep.subr.mxu0 0.0
        %1216 = vmatpush1.msra.mxu0 0.0
        %1217 = vmatprep.subr.mxu0 0.0
        %1218 = vmatpush1.msra.mxu0 0.0
        %1219 = vmatprep.subr.mxu0 0.0
        %1220 = vmatpush1.msra.mxu0 0.0
        %1221 = vmatprep.subr.mxu0 0.0
        %1222 = vmatpush1.msra.mxu0 0.0
        %1223 = vmatprep.subr.mxu0 0.0
        %1224 = vmatpush1.msra.mxu0 0.0
        %1225 = vmatprep.subr.mxu0 0.0
        %1226 = vmatpush1.msra.mxu0 0.0
        %1227 = vmatprep.subr.mxu0 0.0
        %1228 = vmatpush1.msra.mxu0 0.0
        %1229 = vmatprep.subr.mxu0 0.0
        %1230 = vmatpush1.msra.mxu0 0.0
        %1231 = vmatprep.subr.mxu0 0.0
        %1232 = vmatpush1.msra.mxu0 0.0
        %1233 = vmatprep.subr.mxu0 0.0
        %1234 = vmatpush1.msra.mxu0 0.0
        %1235 = vmatprep.subr.mxu0 0.0
        %1236 = vmatpush1.msra.mxu0 0.0
        %1237 = vmatprep.subr.mxu0 0.0
        %1238 = vmatpush1.msra.mxu0 0.0
        %1239 = vmatprep.subr.mxu0 0.0
        %1240 = vmatpush1.msra.mxu0 0.0
        %1241 = vmatprep.subr.mxu0 0.0
        %1242 = vmatpush1.msra.mxu0 0.0
        %1243 = vmatprep.subr.mxu0 0.0
        %1244 = vmatpush1.msra.mxu0 0.0
        %1245 = vmatprep.subr.mxu0 0.0
        %1246 = vmatpush1.msra.mxu0 0.0
        %1247 = vmatprep.subr.mxu0 0.0
        %1248 = vmatpush1.msra.mxu0 0.0
        %1249 = vmatprep.subr.mxu0 0.0
        %1250 = vmatpush1.msra.mxu0 0.0
        %1251 = vmatprep.subr.mxu0 0.0
        %1252 = vmatpush1.msra.mxu0 0.0
        %1253 = vmatprep.subr.mxu0 0.0
        %1254 = vmatpush1.msra.mxu0 0.0
        %1255 = vmatprep.subr.mxu0 0.0
        %1256 = vmatpush1.msra.mxu0 0.0
        %1257 = vmatprep.mubr.f32.mxu0 0.0
        %1258 = vmatmul.mubr.f32.gmra.mrb[0].mxu0 %v1191
        %v1259 = vpop.f32.mrb[0].mxu0
        %v1260 = vadd.f32 %v1188, %v1259
        %v1261 = vpop.f32.mrb[0].mxu0
        %1262 = vdwg.mxu0
        %v1263 = vadd.f32 %v1260, %v334
        %v1265 = vrot.slane %v1263, 1
        %1266 = vrot.lane.b32.xlu0 %v1265, 32
        %v1267 = vpop.permute.xlu0 %1266
        %v1269 = vrot.slane %v1263, 2
        %1270 = vrot.lane.b32.xlu0 %v1269, 64
        %v1271 = vpop.permute.xlu0 %1270
        %v1273 = vrot.slane %v1263, 3
        %1274 = vrot.lane.b32.xlu0 %v1273, 96
        %v1275 = vpop.permute.xlu0 %1274
        %v1277 = vsel %vm346, %v1263, %v1267
        %vm1278 = vcmask 523264
        %v1279 = vsel %vm1278, %v1277, %v1271
        %vm1280 = vcmask 785408
        %v1281 = vsel %vm1280, %v1279, %v1275
        %v1283 = vrot.slane %v1281, 3
        %vm1285 = vcmask 1040384
        %v1286 = vsel %vm1285, %v1281, %v1283
        %1287 = vst [vmem:[%s332] sm:$0x3] %v1286
        %p1288 = scmp.lt.s32.totalorder %s20, 1
        %s1289 = scalar_select %p1288, %s20, 1
        %s1290 = smul.addr %s1289, 2
        %s1291 = scalar_lea.vmem %s8, %s1290
        // Predicated region
        $region57: #{_lambda_.1} parent=51 // pred_check
          %p1292 = pneg %p216
        $region58: #{_lambda_.1} parent=51 // pred_check_branch
          %1294 = sbr.rel (%p1292) target = $region60
        $region59: #{_lambda_.1} parent=51 // pred_region
          _
        $region60: #{_lambda_.1} parent=51 // pred_fallthru
          _
      $region52: #{_lambda_.1} parent=5 // pred_fallthru
        _
      %p1295 = scmp.le.s32.totalorder 2, %s15
      // Predicated region
      $region61: #{_lambda_.1} parent=5 // pred_check
        %p1296 = pneg %p1295
      $region62: #{_lambda_.1} parent=5 // pred_check_branch
        %1298 = sbr.rel (%p1296) target = $region64
      $region63: #{_lambda_.1} parent=5 // pred_region
        %s1299 = ssub.s32 %s15, 2
        // Predicated region
        $region65: #{_lambda_.1} parent=63 // pred_check
          %p1300 = pneg %p222
        $region66: #{_lambda_.1} parent=63 // pred_check_branch
          %1302 = sbr.rel (%p1300) target = $region68
        $region67: #{_lambda_.1} parent=63 // pred_region
          %p1303 = scmp.lt.s32.totalorder %s21, 1
          %s1304 = scalar_select %p1303, %s21, 1
          %s1305 = smul.addr %s1304, 2
          %s1306 = scalar_lea.vmem %s8, %s1305
        $region68: #{_lambda_.1} parent=63 // pred_fallthru
          _
      $region64: #{_lambda_.1} parent=5 // pred_fallthru
        _
    $region6: #{_lambda_.1} parent=1 // loop_footer
      %s19 = sadd.s32 1, %s15
    $region7: #{_lambda_.1} parent=1 // loop_footer_branch
      %14 = sbr.rel target = $region3
    $region8: #{_lambda_.1} parent=1 // loop_exit
      _
    %1307 = vsyncpa [#allocation3], 1
    %s1308 = scalar_lea.sflag [#allocation3], 1
    %1309 = vsyncpa %s1308, 1

</llo_original>
